<compile_context>
chip_gen: v5e
topology: v5e:2x2
jax: 0.10.0
libtpu: 0.0.40
codegen_flags: <defaults>
</compile_context>

<pallas_src>
import jax
import jax.numpy as jnp
from jax import lax
from jax.experimental import pallas as pl
from jax.experimental.pallas import tpu as pltpu

LANES = 128
_MIN_KERNEL_BYTES = 2 * 1024 * 1024   # per input; below this a fused XLA reduce wins
_MIN_BLOCK_ROWS = 256                 # never go below this (multiple of 16)
_PIPELINE_STEPS = 3                   # keep >= this many grid steps per shard


def _chip_config(itemsize):
    """Return (num_tensorcores, target_block_rows) for the local TPU."""
    num_tc = 1
    target_bytes = 2 * 1024 * 1024     # 2 MiB per input per block (v5e/v6e default)
    try:
        kind = jax.devices()[0].device_kind.lower()
    except Exception:
        kind = ""
    if "v7" in kind:
        # Fastest HBM -> step overhead is the largest relative tax; go bigger.
        num_tc, target_bytes = 2, 4 * 1024 * 1024
    elif ("v4" in kind or "v5p" in kind
          or ("v5" in kind and "lite" not in kind and "5e" not in kind)):
        num_tc = 2                     # megacore chips: 2 TCs behind one device
    # Dtype-aware rows: bytes-per-step stay constant for bf16 vs f32.
    target_rows = max(_MIN_BLOCK_ROWS, (target_bytes // (LANES * itemsize)) // 16 * 16)
    return num_tc, target_rows


def _make_kernel(rows, blocks_per_shard, block_rows, needs_mask):
    """Build the reduction kernel with static sizes closed over."""

    def kernel(a_ref, b_ref, o_ref):
        s = pl.program_id(0)   # shard axis (maps to TCs on multi-core chips)
        k = pl.program_id(1)   # reduction step within the shard

        @pl.when(k == 0)
        def _init():
            o_ref[...] = jnp.zeros_like(o_ref)

        a = a_ref[...].astype(jnp.float32)
        b = b_ref[...].astype(jnp.float32)
        d = jnp.abs(a - b)

        def accumulate(x):
            # (block_rows,128) -> (block_rows/8, 8, 128) matches the native
            # (8,128) vreg tiling: pure VPU vreg adds, no relayout.
            o_ref[...] += jnp.sum(x.reshape(-1, 8, LANES), axis=0)

        if not needs_mask:
            accumulate(d)
        else:
            # Mask only the block that actually crosses the logical end (or a
            # clamped duplicate block); interior blocks stay sub/abs/add only.
            block_idx = s * blocks_per_shard + k          # logical, UNclamped
            block_end = (block_idx + 1) * block_rows

            @pl.when(block_end <= rows)
            def _interior():
                accumulate(d)

            @pl.when(block_end > rows)
            def _edge():
                start_row = block_idx * block_rows        # logical start -> zeroes
                row_ids = start_row + lax.broadcasted_iota(   # duplicate clamped blocks
                    jnp.int32, (block_rows, 1), 0)
                accumulate(jnp.where(row_ids < rows, d, 0.0))

    return kernel


def l1_loss_sum(outputs, retransform_output):
    """sum(|outputs - retransform_output|) as a float32 scalar."""
    assert outputs.shape == retransform_output.shape
    a = outputs.reshape(-1)
    b = retransform_output.reshape(-1)
    n = a.shape[0]
    itemsize = max(jnp.dtype(a.dtype).itemsize, jnp.dtype(b.dtype).itemsize)

    # Small / misaligned fallback: a fused XLA reduce is already at HBM
    # roofline for this mem-bound op and avoids any slice / pad copy.
    # TODO(synk): the suggested bulk+tail split for large n % 128 != 0 was not
    # applied: the aligned-prefix slice materialises a full copy across the
    # pallas_call boundary (an extra read+write of ~2N bytes), which costs more
    # HBM traffic than the fused XLA reduction below.
    if n * itemsize < _MIN_KERNEL_BYTES or n % LANES != 0:
        return jnp.sum(jnp.abs(a.astype(jnp.float32) - b.astype(jnp.float32)))

    rows = n // LANES
    a2 = a.reshape(rows, LANES)   # free reshape (bitcast): no pad, no copy
    b2 = b.reshape(rows, LANES)

    num_tc, target_rows = _chip_config(itemsize)
    num_shards = num_tc
    # Cap block size so each shard keeps >= _PIPELINE_STEPS grid steps: with a
    # single step the double-buffer pipeline degenerates to serial DMA+compute.
    cap = (rows // (_PIPELINE_STEPS * num_shards)) // 16 * 16
    block_rows = max(_MIN_BLOCK_ROWS, min(target_rows, cap))

    num_blocks = pl.cdiv(rows, block_rows)
    blocks_per_shard = pl.cdiv(num_blocks, num_shards)
    needs_mask = (num_shards * blocks_per_shard * block_rows) != rows

    def in_map(s, k):
        # Clamp so padded shard iterations stay in-bounds; the in-kernel edge
        # mask (which uses the logical index) zeroes their duplicate data.
        return (jnp.minimum(s * blocks_per_shard + k, num_blocks - 1), 0)

    kernel = _make_kernel(rows, blocks_per_shard, block_rows, needs_mask)

    partials = pl.pallas_call(
        kernel,
        out_shape=jax.ShapeDtypeStruct((num_shards * 8, LANES), jnp.float32),
        grid_spec=pltpu.PrefetchScalarGridSpec(
            num_scalar_prefetch=0,
            grid=(num_shards, blocks_per_shard),
            in_specs=[
                pl.BlockSpec((block_rows, LANES), in_map),
                pl.BlockSpec((block_rows, LANES), in_map),
            ],
            # Per-shard resident (8,128) accumulator block.
            out_specs=pl.BlockSpec((8, LANES), lambda s, k: (s, 0)),
        ),
        # TODO(synk): if plain "parallel" does not split the shard axis across
        # v7x's two TensorCores, switch axis 0 to pltpu.CORE_PARALLEL.
        compiler_params=pltpu.CompilerParams(
            dimension_semantics=("parallel", "arbitrary"),
        ),
    )(a2, b2)

    # Single tiny cross-lane reduction outside the kernel.
    return jnp.sum(partials)


def compute_transform_losses(outputs, retransform_output):
    """JAX/Pallas equivalent of the PyTorch module's forward pass."""
    return l1_loss_sum(outputs, retransform_output)


if __name__ == "__main__":
    key = jax.random.PRNGKey(0)
    k1, k2, k3, k4, k5, k6 = jax.random.split(key, 6)

    # 1) Small NCHW conv-feature shape -> fused-XLA fallback path (also covers n==0 safety).
    x_small = jax.random.normal(k1, (2, 4, 16, 16), dtype=jnp.float32)
    y_small = jax.random.normal(k2, (2, 4, 16, 16), dtype=jnp.float32)
    loss_small = jax.block_until_ready(compute_transform_losses(x_small, y_small))
    ref_small = jnp.sum(jnp.abs(x_small - y_small))
    assert jnp.allclose(loss_small, ref_small, rtol=1e-5, atol=1e-3), (loss_small, ref_small)

    # 2) Larger f32 NCHW shape -> Pallas kernel path (partial last block ->
    #    pl.when-gated edge masking; interior blocks unmasked).
    x_big = jax.random.normal(k3, (2, 64, 64, 80), dtype=jnp.float32)
    y_big = jax.random.normal(k4, (2, 64, 64, 80), dtype=jnp.float32)
    loss_big = jax.block_until_ready(compute_transform_losses(x_big, y_big))
    ref_big = jnp.sum(jnp.abs(x_big - y_big))
    assert jnp.allclose(loss_big, ref_big, rtol=1e-4, atol=1e-1), (loss_big, ref_big)

    # 3) bfloat16 inputs through the kernel path (bf16 across the DMA for half
    #    the HBM read traffic, f32 accumulation in-kernel; dtype-aware block
    #    rows keep bytes-per-step constant).
    x_bf = jax.random.normal(k5, (2, 64, 64, 160), dtype=jnp.float32).astype(jnp.bfloat16)
    y_bf = jax.random.normal(k6, (2, 64, 64, 160), dtype=jnp.float32).astype(jnp.bfloat16)
    loss_bf = jax.block_until_ready(compute_transform_losses(x_bf, y_bf))
    ref_bf = jnp.sum(jnp.abs(x_bf.astype(jnp.float32) - y_bf.astype(jnp.float32)))
    assert jnp.allclose(loss_bf, ref_bf, rtol=1e-4, atol=1e-1), (loss_bf, ref_bf)

    print("KERNEL_OK")
</pallas_src>

<mosaic_0001>
module attributes {stable_mosaic.version = 11 : i64} {
  func.func @kernel(%arg0: i32, %arg1: i32, %arg2: memref<1696x128xf32, #tpu.memory_space<vmem>>, %arg3: memref<1696x128xf32, #tpu.memory_space<vmem>>, %arg4: memref<8x128xf32, #tpu.memory_space<vmem>>) attributes {dimension_semantics = [#tpu.dimension_semantics<parallel>, #tpu.dimension_semantics<arbitrary>], iteration_bounds = array<i64: 1, 4>, scalar_prefetch = 0 : i64, scratch_operands = 0 : i64, tpu.core_type = #tpu.core_type<tc>, window_params = [{transform_indices = @transform_0, window_bounds = array<i64: 1696, 128>}, {transform_indices = @transform_1, window_bounds = array<i64: 1696, 128>}, {transform_indices = @transform_2, window_bounds = array<i64: 8, 128>}]} {
    %c0_i32 = arith.constant 0 : i32
    %0 = arith.cmpi eq, %arg1, %c0_i32 : i32
    %1 = arith.extui %0 : i1 to i32
    %c0_i32_0 = arith.constant 0 : i32
    %2 = arith.cmpi ne, %1, %c0_i32_0 : i32
    scf.if %2 {
      %cst = arith.constant 0.000000e+00 : f32
      %17 = vector.broadcast %cst : f32 to vector<8x128xf32>
      %c0_7 = arith.constant 0 : index
      %c0_8 = arith.constant 0 : index
      %18 = vector.load %arg4[%c0_7, %c0_8] : memref<8x128xf32, #tpu.memory_space<vmem>>, vector<8x128xf32>
      tpu.vector_store %arg4[%c0_7, %c0_8], %17 {strides = array<i32>} : memref<8x128xf32, #tpu.memory_space<vmem>>, vector<8x128xf32>,
    } else {
    }
    %c0 = arith.constant 0 : index
    %c0_1 = arith.constant 0 : index
    %3 = vector.load %arg2[%c0, %c0_1] : memref<1696x128xf32, #tpu.memory_space<vmem>>, vector<1696x128xf32>
    %c0_2 = arith.constant 0 : index
    %c0_3 = arith.constant 0 : index
    %4 = vector.load %arg3[%c0_2, %c0_3] : memref<1696x128xf32, #tpu.memory_space<vmem>>, vector<1696x128xf32>
    %5 = arith.subf %3, %4 : vector<1696x128xf32>
    %6 = math.absf %5 : vector<1696x128xf32>
    %c4_i32 = arith.constant 4 : i32
    %7 = arith.muli %arg0, %c4_i32 : i32
    %8 = arith.addi %7, %arg1 : i32
    %c1_i32 = arith.constant 1 : i32
    %9 = arith.addi %8, %c1_i32 : i32
    %c1696_i32 = arith.constant 1696 : i32
    %10 = arith.muli %9, %c1696_i32 : i32
    %c5120_i32 = arith.constant 5120 : i32
    %11 = arith.cmpi sle, %10, %c5120_i32 : i32
    %12 = arith.extui %11 : i1 to i32
    %c0_i32_4 = arith.constant 0 : i32
    %13 = arith.cmpi ne, %12, %c0_i32_4 : i32
    scf.if %13 {
      %c0_7 = arith.constant 0 : index
      %c0_8 = arith.constant 0 : index
      %17 = vector.load %arg4[%c0_7, %c0_8] : memref<8x128xf32, #tpu.memory_space<vmem>>, vector<8x128xf32>
      %18 = vector.shape_cast %6 : vector<1696x128xf32> to vector<212x8x128xf32>
      %cst = arith.constant dense<0.000000e+00> : vector<8x128xf32>
      %19 = vector.multi_reduction <add>, %18, %cst [0] : vector<212x8x128xf32> to vector<8x128xf32>
      %20 = arith.addf %17, %19 : vector<8x128xf32>
      %c0_9 = arith.constant 0 : index
      %c0_10 = arith.constant 0 : index
      %21 = vector.load %arg4[%c0_9, %c0_10] : memref<8x128xf32, #tpu.memory_space<vmem>>, vector<8x128xf32>
      tpu.vector_store %arg4[%c0_9, %c0_10], %20 {strides = array<i32>} : memref<8x128xf32, #tpu.memory_space<vmem>>, vector<8x128xf32>,
    } else {
    }
    %c5120_i32_5 = arith.constant 5120 : i32
    %14 = arith.cmpi sgt, %10, %c5120_i32_5 : i32
    %15 = arith.extui %14 : i1 to i32
    %c0_i32_6 = arith.constant 0 : i32
    %16 = arith.cmpi ne, %15, %c0_i32_6 : i32
    scf.if %16 {
      %c1696_i32_7 = arith.constant 1696 : i32
      %17 = arith.muli %8, %c1696_i32_7 : i32
      %18 = tpu.iota {dimensions = array<i32: 0>} : vector<1696x1xi32>
      %19 = vector.broadcast %17 : i32 to vector<1696x1xi32>
      %20 = arith.addi %19, %18 : vector<1696x1xi32>
      %c5120_i32_8 = arith.constant 5120 : i32
      %21 = vector.broadcast %c5120_i32_8 : i32 to vector<1696x1xi32>
      %22 = arith.cmpi slt, %20, %21 : vector<1696x1xi32>
      %cst = arith.constant 0.000000e+00 : f32
      %23 = vector.shape_cast %22 : vector<1696x1xi1> to vector<1696x1xi1>
      %24 = vector.broadcast %23 : vector<1696x1xi1> to vector<1696x128xi1>
      %25 = vector.broadcast %cst : f32 to vector<1696x128xf32>
      %26 = arith.select %24, %6, %25 : vector<1696x128xi1>, vector<1696x128xf32>
      %c0_9 = arith.constant 0 : index
      %c0_10 = arith.constant 0 : index
      %27 = vector.load %arg4[%c0_9, %c0_10] : memref<8x128xf32, #tpu.memory_space<vmem>>, vector<8x128xf32>
      %28 = vector.shape_cast %26 : vector<1696x128xf32> to vector<212x8x128xf32>
      %cst_11 = arith.constant dense<0.000000e+00> : vector<8x128xf32>
      %29 = vector.multi_reduction <add>, %28, %cst_11 [0] : vector<212x8x128xf32> to vector<8x128xf32>
      %30 = arith.addf %27, %29 : vector<8x128xf32>
      %c0_12 = arith.constant 0 : index
      %c0_13 = arith.constant 0 : index
      %31 = vector.load %arg4[%c0_12, %c0_13] : memref<8x128xf32, #tpu.memory_space<vmem>>, vector<8x128xf32>
      tpu.vector_store %arg4[%c0_12, %c0_13], %30 {strides = array<i32>} : memref<8x128xf32, #tpu.memory_space<vmem>>, vector<8x128xf32>,
    } else {
    }
    return
  }
  func.func @transform_0(%arg0: i32, %arg1: i32) -> (i32, i32) {
    %c4_i32 = arith.constant 4 : i32
    %0 = arith.muli %arg0, %c4_i32 : i32
    %1 = arith.addi %0, %arg1 : i32
    %c3_i32 = arith.constant 3 : i32
    %2 = arith.minsi %1, %c3_i32 : i32
    %c0_i32 = arith.constant 0 : i32
    %c0_i32_0 = arith.constant 0 : i32
    return %2, %c0_i32 : i32, i32
  }
  func.func @transform_1(%arg0: i32, %arg1: i32) -> (i32, i32) {
    %c4_i32 = arith.constant 4 : i32
    %0 = arith.muli %arg0, %c4_i32 : i32
    %1 = arith.addi %0, %arg1 : i32
    %c3_i32 = arith.constant 3 : i32
    %2 = arith.minsi %1, %c3_i32 : i32
    %c0_i32 = arith.constant 0 : i32
    %c0_i32_0 = arith.constant 0 : i32
    return %2, %c0_i32 : i32, i32
  }
  func.func @transform_2(%arg0: i32, %arg1: i32) -> (i32, i32) {
    %c0_i32 = arith.constant 0 : i32
    %c0_i32_0 = arith.constant 0 : i32
    return %arg0, %c0_i32 : i32, i32
  }
}

</mosaic_0001>

<llo_original>
// kernel: tpu_custom_call.1
$region0: #{tpu_custom_call.1}
  #allocation0 [shape = 'u32[]', space=smem, size = 0x4, offset = 0x4, fixed_abs, tag = 'smem constant byte address 0x4 - core index']
  #allocation1 [shape = 'u32[72,128]{1,0:T(1,128)}', space=vmem, size = 0x9000, scoped, tag = 'internal scratch']
  %s0 = inlined_call_operand.hbm [shape: f32[5120,128], index: 0, kind: input, shape index: {}]
  %s1 = inlined_call_operand.hbm [shape: f32[5120,128], index: 1, kind: input, shape index: {}]
  %s2 = inlined_call_operand.hbm [shape: f32[8,128], index: 2, kind: output, shape index: {}]
  %s3 = sld [smem:[#allocation0]]
  $region61: #{tpu_custom_call.1} parent=0
    _
  %s5 = ssub.s32 1, %s3
  %s6 = scalar_select 0, %s5, %s3
  $region1: #{tpu_custom_call.1} parent=0
    #allocation2 [shape = 'u8[1736704]{0}', space=vmem, size = 0x1a8000, scoped, tag = 'input window, operand 0']
    #allocation3 [shape = 's32[2]{0}', space=sflag, size = 0x8, scoped, tag = 'scoped memory for tpu_custom_call.1']
    #allocation4 [shape = 's32[2]{0}', space=sflag, size = 0x8, scoped, tag = 'scoped memory for tpu_custom_call.1']
    #allocation5 [shape = 'u8[1736704]{0}', space=vmem, size = 0x1a8000, scoped, tag = 'input window, operand 1']
    #allocation6 [shape = 's32[2]{0}', space=sflag, size = 0x8, scoped, tag = 'scoped memory for tpu_custom_call.1']
    #allocation7 [shape = 'u8[4096]{0}', space=vmem, size = 0x1000, scoped, tag = 'output window, operand 0, single buffered']
    %7 = vsyncpa [#allocation3], 0
    %s8 = scalar_lea.sflag [#allocation3], 1
    %9 = vsyncpa %s8, 0
    %10 = vsyncpa [#allocation6], 0
    %s11 = scalar_lea.sflag [#allocation6], 1
    %12 = vsyncpa %s11, 0
    %13 = vsyncpa [#allocation4], 0
    loop: start=0, step=1, limit=6
    $region2: #{tpu_custom_call.1} parent=1 // loop_pre_header
      _
    $region3: #{tpu_custom_call.1} parent=1 // loop_header
      %s15 = sphi 0, %s19
      %p16 = scmp.ge.s32.totalorder %s15, 6
      %s22 = sphi 0, %s34
      %s23 = sphi 0, %s30
      %s24 = sphi 0, %s22
      %s25 = sphi 0, %s23
      %s26 = sphi 0, %s24
      %s27 = sphi 0, %s25
      %s45 = sphi 0, %s47
      %s48 = sphi 0, %s45
      %s49 = sphi 0, %s48
      %s65 = sphi 0, %s49
      %s79 = sphi 0, %s81
      %s82 = sphi 0, %s79
      %s83 = sphi 0, %s82
      %s99 = sphi 0, %s83
      %s105 = sphi 0, %s107
      %s108 = sphi 0, %s105
      %s109 = sphi 0, %s108
      %s125 = sphi 0, %s109
    $region4: #{tpu_custom_call.1} parent=1 // loop_header_branch
      %18 = sbr.rel (%p16) target = $region8
    $region5: #{tpu_custom_call.1} parent=1 // loop_body
      %s20 = ssub.s32 %s15, 1
      %s21 = ssub.s32 %s15, 2
      %s28 = sadd.s32 1, %s23
      %p29 = scmp.ge.s32.totalorder %s28, 4
      %s30 = scalar_select %p29, 0, %s28
      %s31 = sadd.s32 1, %s22
      %s32 = scalar_select %p29, %s31, %s22
      %p33 = scmp.ge.s32.totalorder %s32, 1
      %s34 = scalar_select %p33, 0, %s32
      %s35 = smul.u32 %s22, 4
      %s36 = sadd.s32 %s35, %s23
      %p37 = scmp.lt.s32.totalorder %s36, 3
      %s38 = scalar_select %p37, %s36, 3
      %s39 = smul.u32 %s34, 4
      %s40 = sadd.s32 %s39, %s30
      %p41 = scmp.lt.s32.totalorder %s40, 3
      %s42 = scalar_select %p41, %s40, 3
      %s43 = ssub.s32 %s38, %s42
      %p44 = scmp.eq.s32.totalorder %s43, 0
      %s46 = sadd.s32 %s45, 1
      %s47 = scalar_select %p44, %s45, %s46
      %p50 = pneg %p44
      %p51 = scmp.eq.s32.totalorder %s15, 3
      %p52 = por %p50, %p51
      %p53 = scmp.ne.s32.totalorder %s45, %s48
      %p54 = scmp.eq.s32.totalorder %s15, 0
      %p55 = por %p53, %p54
      %p56 = scmp.ne.s32.totalorder %s45, %s48
      %p57 = scmp.eq.s32.totalorder %s20, 3
      %p58 = por %p56, %p57
      %p59 = scmp.ne.s32.totalorder %s48, %s49
      %p60 = scmp.eq.s32.totalorder %s20, 0
      %p61 = por %p59, %p60
      %p62 = scmp.ne.s32.totalorder %s48, %s49
      %p63 = scmp.eq.s32.totalorder %s21, 3
      %p64 = por %p62, %p63
      %p66 = scmp.ne.s32.totalorder %s49, %s65
      %p67 = scmp.eq.s32.totalorder %s21, 0
      %p68 = por %p66, %p67
      %s69 = smul.u32 %s22, 4
      %s70 = sadd.s32 %s69, %s23
      %p71 = scmp.lt.s32.totalorder %s70, 3
      %s72 = scalar_select %p71, %s70, 3
      %s73 = smul.u32 %s34, 4
      %s74 = sadd.s32 %s73, %s30
      %p75 = scmp.lt.s32.totalorder %s74, 3
      %s76 = scalar_select %p75, %s74, 3
      %s77 = ssub.s32 %s72, %s76
      %p78 = scmp.eq.s32.totalorder %s77, 0
      %s80 = sadd.s32 %s79, 1
      %s81 = scalar_select %p78, %s79, %s80
      %p84 = pneg %p78
      %p85 = scmp.eq.s32.totalorder %s15, 3
      %p86 = por %p84, %p85
      %p87 = scmp.ne.s32.totalorder %s79, %s82
      %p88 = scmp.eq.s32.totalorder %s15, 0
      %p89 = por %p87, %p88
      %p90 = scmp.ne.s32.totalorder %s79, %s82
      %p91 = scmp.eq.s32.totalorder %s20, 3
      %p92 = por %p90, %p91
      %p93 = scmp.ne.s32.totalorder %s82, %s83
      %p94 = scmp.eq.s32.totalorder %s20, 0
      %p95 = por %p93, %p94
      %p96 = scmp.ne.s32.totalorder %s82, %s83
      %p97 = scmp.eq.s32.totalorder %s21, 3
      %p98 = por %p96, %p97
      %p100 = scmp.ne.s32.totalorder %s83, %s99
      %p101 = scmp.eq.s32.totalorder %s21, 0
      %p102 = por %p100, %p101
      %s103 = ssub.s32 %s22, %s34
      %p104 = scmp.eq.s32.totalorder %s103, 0
      %s106 = sadd.s32 %s105, 1
      %s107 = scalar_select %p104, %s105, %s106
      %p110 = pneg %p104
      %p111 = scmp.eq.s32.totalorder %s15, 3
      %p112 = por %p110, %p111
      %p113 = scmp.ne.s32.totalorder %s105, %s108
      %p114 = scmp.eq.s32.totalorder %s15, 0
      %p115 = por %p113, %p114
      %p116 = scmp.ne.s32.totalorder %s105, %s108
      %p117 = scmp.eq.s32.totalorder %s20, 3
      %p118 = por %p116, %p117
      %p119 = scmp.ne.s32.totalorder %s108, %s109
      %p120 = scmp.eq.s32.totalorder %s20, 0
      %p121 = por %p119, %p120
      %p122 = scmp.ne.s32.totalorder %s108, %s109
      %p123 = scmp.eq.s32.totalorder %s21, 3
      %p124 = por %p122, %p123
      %p126 = scmp.ne.s32.totalorder %s109, %s125
      %p127 = scmp.eq.s32.totalorder %s21, 0
      %p128 = por %p126, %p127
      %p129 = scmp.le.s32.totalorder 1, %s15
      %p130 = scmp.lt.s32.totalorder %s15, 5
      %p131 = pnand %p129, %p130
      %p132 = pneg %p131
      // Predicated region
      $region9: #{tpu_custom_call.1} parent=5 // pred_check
        _
      $region10: #{tpu_custom_call.1} parent=5 // pred_check_branch
        %134 = sbr.rel (%p131) target = $region12
      $region11: #{tpu_custom_call.1} parent=5 // pred_region
        %s135 = ssub.s32 %s15, 1
      $region12: #{tpu_custom_call.1} parent=5 // pred_fallthru
        _
      %p136 = scmp.lt.s32.totalorder %s15, 4
      // Predicated region
      $region13: #{tpu_custom_call.1} parent=5 // pred_check
        %p137 = pneg %p136
      $region14: #{tpu_custom_call.1} parent=5 // pred_check_branch
        %139 = sbr.rel (%p137) target = $region16
      $region15: #{tpu_custom_call.1} parent=5 // pred_region
        // Predicated region
        $region17: #{tpu_custom_call.1} parent=15 // pred_check
          %p140 = pneg %p55
        $region18: #{tpu_custom_call.1} parent=15 // pred_check_branch
          %142 = sbr.rel (%p140) target = $region20
        $region19: #{tpu_custom_call.1} parent=15 // pred_region
          %s143 = sand.u32 %s45, 1
          %s144 = scalar_lea.sflag [#allocation3], %s143
          %s145 = sand.u32 %s45, 1
          %s146 = smul.addr %s145, 1696
          %s147 = scalar_lea.vmem [#allocation2], %s146
          %s148 = smul.u32 %s22, 4
          %s149 = sadd.s32 %s148, %s23
          %p150 = scmp.lt.s32.totalorder %s149, 3
          %s151 = scalar_select %p150, %s149, 3
          %s152 = smul.u32 212, %s151
          %s153 = ssub.s32 640, %s152
          %p154 = scmp.lt.s32.totalorder %s153, 212
          %s155 = scalar_select %p154, %s153, 212
          %s156 = smul.u32 8, %s155
          %s157 = ssub.s32 1696, %s156
          %s158 = sshll.u32 %s157, 4
          %159 = vsyncadd %s144, %s158
          %p160 = scmp.ne.s32.totalorder 0, %s156
          %s161 = smul.addr %s152, 8
          %s162 = scalar_lea.hbm %s0, %s161
          %s163 = smul.u32 8, %s155
          %s164 = sshll.u32 %s162, 4
          %s165 = int_to_ptr.hbm [resolvable:$true] %s164
          %s166 = sshll.u32 %s147, 4
          %s167 = int_to_ptr.vmem [resolvable:$true] %s166
          %s168 = sshll.u32 %s163, 4
          %172 = dma.hbm_to_vmem [thread:$0]  (%p160), %s165, %s168, %s167, %s144, 128, 128, 8
        $region20: #{tpu_custom_call.1} parent=15 // pred_fallthru
          _
        // Predicated region
        $region21: #{tpu_custom_call.1} parent=15 // pred_check
          %p173 = pneg %p89
        $region22: #{tpu_custom_call.1} parent=15 // pred_check_branch
          %175 = sbr.rel (%p173) target = $region24
        $region23: #{tpu_custom_call.1} parent=15 // pred_region
          %s176 = sand.u32 %s79, 1
          %s177 = scalar_lea.sflag [#allocation6], %s176
          %s178 = sand.u32 %s79, 1
          %s179 = smul.addr %s178, 1696
          %s180 = scalar_lea.vmem [#allocation5], %s179
          %s181 = smul.u32 %s22, 4
          %s182 = sadd.s32 %s181, %s23
          %p183 = scmp.lt.s32.totalorder %s182, 3
          %s184 = scalar_select %p183, %s182, 3
          %s185 = smul.u32 212, %s184
          %s186 = ssub.s32 640, %s185
          %p187 = scmp.lt.s32.totalorder %s186, 212
          %s188 = scalar_select %p187, %s186, 212
          %s189 = smul.u32 8, %s188
          %s190 = ssub.s32 1696, %s189
          %s191 = sshll.u32 %s190, 4
          %192 = vsyncadd %s177, %s191
          %p193 = scmp.ne.s32.totalorder 0, %s189
          %s194 = smul.addr %s185, 8
          %s195 = scalar_lea.hbm %s1, %s194
          %s196 = smul.u32 8, %s188
          %s197 = sshll.u32 %s195, 4
          %s198 = int_to_ptr.hbm [resolvable:$true] %s197
          %s199 = sshll.u32 %s180, 4
          %s200 = int_to_ptr.vmem [resolvable:$true] %s199
          %s201 = sshll.u32 %s196, 4
          %205 = dma.hbm_to_vmem [thread:$0]  (%p193), %s198, %s201, %s200, %s177, 128, 128, 8
        $region24: #{tpu_custom_call.1} parent=15 // pred_fallthru
          _
      $region16: #{tpu_custom_call.1} parent=5 // pred_fallthru
        _
      %p206 = scmp.le.s32.totalorder 1, %s15
      %p207 = scmp.lt.s32.totalorder %s15, 5
      %p208 = pnand %p206, %p207
      %p209 = pneg %p208
      // Predicated region
      $region25: #{tpu_custom_call.1} parent=5 // pred_check
        _
      $region26: #{tpu_custom_call.1} parent=5 // pred_check_branch
        %211 = sbr.rel (%p208) target = $region28
      $region27: #{tpu_custom_call.1} parent=5 // pred_region
        %s212 = ssub.s32 %s15, 1
        %s213 = sand.u32 %s48, 1
        %s214 = scalar_lea.sflag [#allocation3], %s213
        %s215 = sand.u32 %s48, 1
        %s216 = smul.addr %s215, 1696
        %s217 = scalar_lea.vmem [#allocation2], %s216
        // Predicated region
        $region29: #{tpu_custom_call.1} parent=27 // pred_check
          %p218 = pneg %p61
        $region30: #{tpu_custom_call.1} parent=27 // pred_check_branch
          %220 = sbr.rel (%p218) target = $region32
        $region31: #{tpu_custom_call.1} parent=27 // pred_region
          %222 = dma.done %s214, 27136
        $region32: #{tpu_custom_call.1} parent=27 // pred_fallthru
          _
        %s223 = sand.u32 %s82, 1
        %s224 = scalar_lea.sflag [#allocation6], %s223
        %s225 = sand.u32 %s82, 1
        %s226 = smul.addr %s225, 1696
        %s227 = scalar_lea.vmem [#allocation5], %s226
        // Predicated region
        $region33: #{tpu_custom_call.1} parent=27 // pred_check
          %p228 = pneg %p95
        $region34: #{tpu_custom_call.1} parent=27 // pred_check_branch
          %230 = sbr.rel (%p228) target = $region36
        $region35: #{tpu_custom_call.1} parent=27 // pred_region
          %232 = dma.done %s224, 27136
        $region36: #{tpu_custom_call.1} parent=27 // pred_fallthru
          _
        %s233 = sand.u32 %s48, 1
        %s234 = scalar_lea.sflag [#allocation3], %s233
        %s235 = sand.u32 %s48, 1
        %s236 = smul.addr %s235, 1696
        %s237 = scalar_lea.vmem [#allocation2], %s236
        %p238 = pneg %p61
        %p239 = pneg %p58
        %s240 = sand.u32 %s82, 1
        %s241 = scalar_lea.sflag [#allocation6], %s240
        %s242 = sand.u32 %s82, 1
        %s243 = smul.addr %s242, 1696
        %s244 = scalar_lea.vmem [#allocation5], %s243
        %p245 = pneg %p95
        %p246 = pneg %p92
        %p247 = pneg %p121
        %p248 = pneg %p118
        %s249 = smul.u32 %s24, 4
        %s250 = sadd.s32 %s249, %s25
        %p251 = scmp.lt.s32.totalorder %s250, 3
        %s252 = scalar_select %p251, %s250, 3
        %s253 = smul.u32 212, %s252
        %s254 = ssub.s32 640, %s253
        %p255 = scmp.lt.s32.totalorder %s254, 212
        %s256 = scalar_select %p255, %s254, 212
        %s257 = smul.u32 8, %s256
        %s258 = smul.u32 %s24, 4
        %s259 = sadd.s32 %s258, %s25
        %p260 = scmp.lt.s32.totalorder %s259, 3
        %s261 = scalar_select %p260, %s259, 3
        %s262 = smul.u32 212, %s261
        %s263 = ssub.s32 640, %s262
        %p264 = scmp.lt.s32.totalorder %s263, 212
        %s265 = scalar_select %p264, %s263, 212
        %s266 = smul.u32 8, %s265
        %p267 = scmp.eq.s32.totalorder %s25, 0
        // Predicated region
        $region37: #{tpu_custom_call.1} parent=27 // pred_check
          %p268 = pneg %p267
        $region38: #{tpu_custom_call.1} parent=27 // pred_check_branch
          %270 = sbr.rel (%p268) target = $region40
        $region39: #{tpu_custom_call.1} parent=27 // pred_region
          %271 = vst [vmem:[#allocation7] sm:$0xff] 0.0
        $region40: #{tpu_custom_call.1} parent=27 // pred_fallthru
          _
        %v272 = vld [vmem:[%s217] sm:$0xff]
        %v273 = vld [vmem:[%s217 + $0x8] sm:$0xff]
        %v274 = vld [vmem:[%s217 + $0x10] sm:$0xff]
        %v275 = vld [vmem:[%s217 + $0x18] sm:$0xff]
        %v276 = vld [vmem:[%s217 + $0x20] sm:$0xff]
        %v277 = vld [vmem:[%s217 + $0x28] sm:$0xff]
        %v278 = vld [vmem:[%s217 + $0x30] sm:$0xff]
        %v279 = vld [vmem:[%s217 + $0x38] sm:$0xff]
        %v280 = vld [vmem:[%s217 + $0x40] sm:$0xff]
        %v281 = vld [vmem:[%s217 + $0x48] sm:$0xff]
        %v282 = vld [vmem:[%s217 + $0x50] sm:$0xff]
        %v283 = vld [vmem:[%s217 + $0x58] sm:$0xff]
        %v284 = vld [vmem:[%s217 + $0x60] sm:$0xff]
        %v285 = vld [vmem:[%s217 + $0x68] sm:$0xff]
        %v286 = vld [vmem:[%s217 + $0x70] sm:$0xff]
        %v287 = vld [vmem:[%s217 + $0x78] sm:$0xff]
        %v288 = vld [vmem:[%s217 + $0x80] sm:$0xff]
        %v289 = vld [vmem:[%s217 + $0x88] sm:$0xff]
        %v290 = vld [vmem:[%s217 + $0x90] sm:$0xff]
        %v291 = vld [vmem:[%s217 + $0x98] sm:$0xff]
        %v292 = vld [vmem:[%s217 + $0xa0] sm:$0xff]
        %v293 = vld [vmem:[%s217 + $0xa8] sm:$0xff]
        %v294 = vld [vmem:[%s217 + $0xb0] sm:$0xff]
        %v295 = vld [vmem:[%s217 + $0xb8] sm:$0xff]
        %v296 = vld [vmem:[%s217 + $0xc0] sm:$0xff]
        %v297 = vld [vmem:[%s217 + $0xc8] sm:$0xff]
        %v298 = vld [vmem:[%s217 + $0xd0] sm:$0xff]
        %v299 = vld [vmem:[%s217 + $0xd8] sm:$0xff]
        %v300 = vld [vmem:[%s217 + $0xe0] sm:$0xff]
        %v301 = vld [vmem:[%s217 + $0xe8] sm:$0xff]
        %v302 = vld [vmem:[%s217 + $0xf0] sm:$0xff]
        %v303 = vld [vmem:[%s217 + $0xf8] sm:$0xff]
        %v304 = vld [vmem:[%s217 + $0x100] sm:$0xff]
        %v305 = vld [vmem:[%s217 + $0x108] sm:$0xff]
        %v306 = vld [vmem:[%s217 + $0x110] sm:$0xff]
        %v307 = vld [vmem:[%s217 + $0x118] sm:$0xff]
        %v308 = vld [vmem:[%s217 + $0x120] sm:$0xff]
        %v309 = vld [vmem:[%s217 + $0x128] sm:$0xff]
        %v310 = vld [vmem:[%s217 + $0x130] sm:$0xff]
        %v311 = vld [vmem:[%s217 + $0x138] sm:$0xff]
        %v312 = vld [vmem:[%s217 + $0x140] sm:$0xff]
        %v313 = vld [vmem:[%s217 + $0x148] sm:$0xff]
        %v314 = vld [vmem:[%s217 + $0x150] sm:$0xff]
        %v315 = vld [vmem:[%s217 + $0x158] sm:$0xff]
        %v316 = vld [vmem:[%s217 + $0x160] sm:$0xff]
        %v317 = vld [vmem:[%s217 + $0x168] sm:$0xff]
        %v318 = vld [vmem:[%s217 + $0x170] sm:$0xff]
        %v319 = vld [vmem:[%s217 + $0x178] sm:$0xff]
        %v320 = vld [vmem:[%s217 + $0x180] sm:$0xff]
        %v321 = vld [vmem:[%s217 + $0x188] sm:$0xff]
        %v322 = vld [vmem:[%s217 + $0x190] sm:$0xff]
        %v323 = vld [vmem:[%s217 + $0x198] sm:$0xff]
        %v324 = vld [vmem:[%s217 + $0x1a0] sm:$0xff]
        %v325 = vld [vmem:[%s217 + $0x1a8] sm:$0xff]
        %v326 = vld [vmem:[%s217 + $0x1b0] sm:$0xff]
        %v327 = vld [vmem:[%s217 + $0x1b8] sm:$0xff]
        %v328 = vld [vmem:[%s217 + $0x1c0] sm:$0xff]
        %v329 = vld [vmem:[%s217 + $0x1c8] sm:$0xff]
        %v330 = vld [vmem:[%s217 + $0x1d0] sm:$0xff]
        %v331 = vld [vmem:[%s217 + $0x1d8] sm:$0xff]
        %v332 = vld [vmem:[%s217 + $0x1e0] sm:$0xff]
        %v333 = vld [vmem:[%s217 + $0x1e8] sm:$0xff]
        %v334 = vld [vmem:[%s217 + $0x1f0] sm:$0xff]
        %v335 = vld [vmem:[%s217 + $0x1f8] sm:$0xff]
        %v336 = vld [vmem:[%s217 + $0x200] sm:$0xff]
        %v337 = vld [vmem:[%s217 + $0x208] sm:$0xff]
        %v338 = vld [vmem:[%s217 + $0x210] sm:$0xff]
        %v339 = vld [vmem:[%s217 + $0x218] sm:$0xff]
        %v340 = vld [vmem:[%s217 + $0x220] sm:$0xff]
        %v341 = vld [vmem:[%s217 + $0x228] sm:$0xff]
        %v342 = vld [vmem:[%s217 + $0x230] sm:$0xff]
        %v343 = vld [vmem:[%s217 + $0x238] sm:$0xff]
        %v344 = vld [vmem:[%s217 + $0x240] sm:$0xff]
        %v345 = vld [vmem:[%s217 + $0x248] sm:$0xff]
        %v346 = vld [vmem:[%s217 + $0x250] sm:$0xff]
        %v347 = vld [vmem:[%s217 + $0x258] sm:$0xff]
        %v348 = vld [vmem:[%s217 + $0x260] sm:$0xff]
        %v349 = vld [vmem:[%s217 + $0x268] sm:$0xff]
        %v350 = vld [vmem:[%s217 + $0x270] sm:$0xff]
        %v351 = vld [vmem:[%s217 + $0x278] sm:$0xff]
        %v352 = vld [vmem:[%s217 + $0x280] sm:$0xff]
        %v353 = vld [vmem:[%s217 + $0x288] sm:$0xff]
        %v354 = vld [vmem:[%s217 + $0x290] sm:$0xff]
        %v355 = vld [vmem:[%s217 + $0x298] sm:$0xff]
        %v356 = vld [vmem:[%s217 + $0x2a0] sm:$0xff]
        %v357 = vld [vmem:[%s217 + $0x2a8] sm:$0xff]
        %v358 = vld [vmem:[%s217 + $0x2b0] sm:$0xff]
        %v359 = vld [vmem:[%s217 + $0x2b8] sm:$0xff]
        %v360 = vld [vmem:[%s217 + $0x2c0] sm:$0xff]
        %v361 = vld [vmem:[%s217 + $0x2c8] sm:$0xff]
        %v362 = vld [vmem:[%s217 + $0x2d0] sm:$0xff]
        %v363 = vld [vmem:[%s217 + $0x2d8] sm:$0xff]
        %v364 = vld [vmem:[%s217 + $0x2e0] sm:$0xff]
        %v365 = vld [vmem:[%s217 + $0x2e8] sm:$0xff]
        %v366 = vld [vmem:[%s217 + $0x2f0] sm:$0xff]
        %v367 = vld [vmem:[%s217 + $0x2f8] sm:$0xff]
        %v368 = vld [vmem:[%s217 + $0x300] sm:$0xff]
        %v369 = vld [vmem:[%s217 + $0x308] sm:$0xff]
        %v370 = vld [vmem:[%s217 + $0x310] sm:$0xff]
        %v371 = vld [vmem:[%s217 + $0x318] sm:$0xff]
        %v372 = vld [vmem:[%s217 + $0x320] sm:$0xff]
        %v373 = vld [vmem:[%s217 + $0x328] sm:$0xff]
        %v374 = vld [vmem:[%s217 + $0x330] sm:$0xff]
        %v375 = vld [vmem:[%s217 + $0x338] sm:$0xff]
        %v376 = vld [vmem:[%s217 + $0x340] sm:$0xff]
        %v377 = vld [vmem:[%s217 + $0x348] sm:$0xff]
        %v378 = vld [vmem:[%s217 + $0x350] sm:$0xff]
        %v379 = vld [vmem:[%s217 + $0x358] sm:$0xff]
        %v380 = vld [vmem:[%s217 + $0x360] sm:$0xff]
        %v381 = vld [vmem:[%s217 + $0x368] sm:$0xff]
        %v382 = vld [vmem:[%s217 + $0x370] sm:$0xff]
        %v383 = vld [vmem:[%s217 + $0x378] sm:$0xff]
        %v384 = vld [vmem:[%s217 + $0x380] sm:$0xff]
        %v385 = vld [vmem:[%s217 + $0x388] sm:$0xff]
        %v386 = vld [vmem:[%s217 + $0x390] sm:$0xff]
        %v387 = vld [vmem:[%s217 + $0x398] sm:$0xff]
        %v388 = vld [vmem:[%s217 + $0x3a0] sm:$0xff]
        %v389 = vld [vmem:[%s217 + $0x3a8] sm:$0xff]
        %v390 = vld [vmem:[%s217 + $0x3b0] sm:$0xff]
        %v391 = vld [vmem:[%s217 + $0x3b8] sm:$0xff]
        %v392 = vld [vmem:[%s217 + $0x3c0] sm:$0xff]
        %v393 = vld [vmem:[%s217 + $0x3c8] sm:$0xff]
        %v394 = vld [vmem:[%s217 + $0x3d0] sm:$0xff]
        %v395 = vld [vmem:[%s217 + $0x3d8] sm:$0xff]
        %v396 = vld [vmem:[%s217 + $0x3e0] sm:$0xff]
        %v397 = vld [vmem:[%s217 + $0x3e8] sm:$0xff]
        %v398 = vld [vmem:[%s217 + $0x3f0] sm:$0xff]
        %v399 = vld [vmem:[%s217 + $0x3f8] sm:$0xff]
        %v400 = vld [vmem:[%s217 + $0x400] sm:$0xff]
        %v401 = vld [vmem:[%s217 + $0x408] sm:$0xff]
        %v402 = vld [vmem:[%s217 + $0x410] sm:$0xff]
        %v403 = vld [vmem:[%s217 + $0x418] sm:$0xff]
        %v404 = vld [vmem:[%s217 + $0x420] sm:$0xff]
        %v405 = vld [vmem:[%s217 + $0x428] sm:$0xff]
        %v406 = vld [vmem:[%s217 + $0x430] sm:$0xff]
        %v407 = vld [vmem:[%s217 + $0x438] sm:$0xff]
        %v408 = vld [vmem:[%s217 + $0x440] sm:$0xff]
        %v409 = vld [vmem:[%s217 + $0x448] sm:$0xff]
        %v410 = vld [vmem:[%s217 + $0x450] sm:$0xff]
        %v411 = vld [vmem:[%s217 + $0x458] sm:$0xff]
        %v412 = vld [vmem:[%s217 + $0x460] sm:$0xff]
        %v413 = vld [vmem:[%s217 + $0x468] sm:$0xff]
        %v414 = vld [vmem:[%s217 + $0x470] sm:$0xff]
        %v415 = vld [vmem:[%s217 + $0x478] sm:$0xff]
        %v416 = vld [vmem:[%s217 + $0x480] sm:$0xff]
        %v417 = vld [vmem:[%s217 + $0x488] sm:$0xff]
        %v418 = vld [vmem:[%s217 + $0x490] sm:$0xff]
        %v419 = vld [vmem:[%s217 + $0x498] sm:$0xff]
        %v420 = vld [vmem:[%s217 + $0x4a0] sm:$0xff]
        %v421 = vld [vmem:[%s217 + $0x4a8] sm:$0xff]
        %v422 = vld [vmem:[%s217 + $0x4b0] sm:$0xff]
        %v423 = vld [vmem:[%s217 + $0x4b8] sm:$0xff]
        %v424 = vld [vmem:[%s217 + $0x4c0] sm:$0xff]
        %v425 = vld [vmem:[%s217 + $0x4c8] sm:$0xff]
        %v426 = vld [vmem:[%s217 + $0x4d0] sm:$0xff]
        %v427 = vld [vmem:[%s217 + $0x4d8] sm:$0xff]
        %v428 = vld [vmem:[%s217 + $0x4e0] sm:$0xff]
        %v429 = vld [vmem:[%s217 + $0x4e8] sm:$0xff]
        %v430 = vld [vmem:[%s217 + $0x4f0] sm:$0xff]
        %v431 = vld [vmem:[%s217 + $0x4f8] sm:$0xff]
        %v432 = vld [vmem:[%s217 + $0x500] sm:$0xff]
        %v433 = vld [vmem:[%s217 + $0x508] sm:$0xff]
        %v434 = vld [vmem:[%s217 + $0x510] sm:$0xff]
        %v435 = vld [vmem:[%s217 + $0x518] sm:$0xff]
        %v436 = vld [vmem:[%s217 + $0x520] sm:$0xff]
        %v437 = vld [vmem:[%s217 + $0x528] sm:$0xff]
        %v438 = vld [vmem:[%s217 + $0x530] sm:$0xff]
        %v439 = vld [vmem:[%s217 + $0x538] sm:$0xff]
        %v440 = vld [vmem:[%s217 + $0x540] sm:$0xff]
        %v441 = vld [vmem:[%s217 + $0x548] sm:$0xff]
        %v442 = vld [vmem:[%s217 + $0x550] sm:$0xff]
        %v443 = vld [vmem:[%s217 + $0x558] sm:$0xff]
        %v444 = vld [vmem:[%s217 + $0x560] sm:$0xff]
        %v445 = vld [vmem:[%s217 + $0x568] sm:$0xff]
        %v446 = vld [vmem:[%s217 + $0x570] sm:$0xff]
        %v447 = vld [vmem:[%s217 + $0x578] sm:$0xff]
        %v448 = vld [vmem:[%s217 + $0x580] sm:$0xff]
        %v449 = vld [vmem:[%s217 + $0x588] sm:$0xff]
        %v450 = vld [vmem:[%s217 + $0x590] sm:$0xff]
        %v451 = vld [vmem:[%s217 + $0x598] sm:$0xff]
        %v452 = vld [vmem:[%s217 + $0x5a0] sm:$0xff]
        %v453 = vld [vmem:[%s217 + $0x5a8] sm:$0xff]
        %v454 = vld [vmem:[%s217 + $0x5b0] sm:$0xff]
        %v455 = vld [vmem:[%s217 + $0x5b8] sm:$0xff]
        %v456 = vld [vmem:[%s217 + $0x5c0] sm:$0xff]
        %v457 = vld [vmem:[%s217 + $0x5c8] sm:$0xff]
        %v458 = vld [vmem:[%s217 + $0x5d0] sm:$0xff]
        %v459 = vld [vmem:[%s217 + $0x5d8] sm:$0xff]
        %v460 = vld [vmem:[%s217 + $0x5e0] sm:$0xff]
        %v461 = vld [vmem:[%s217 + $0x5e8] sm:$0xff]
        %v462 = vld [vmem:[%s217 + $0x5f0] sm:$0xff]
        %v463 = vld [vmem:[%s217 + $0x5f8] sm:$0xff]
        %v464 = vld [vmem:[%s217 + $0x600] sm:$0xff]
        %v465 = vld [vmem:[%s217 + $0x608] sm:$0xff]
        %v466 = vld [vmem:[%s217 + $0x610] sm:$0xff]
        %v467 = vld [vmem:[%s217 + $0x618] sm:$0xff]
        %v468 = vld [vmem:[%s217 + $0x620] sm:$0xff]
        %v469 = vld [vmem:[%s217 + $0x628] sm:$0xff]
        %v470 = vld [vmem:[%s217 + $0x630] sm:$0xff]
        %v471 = vld [vmem:[%s217 + $0x638] sm:$0xff]
        %v472 = vld [vmem:[%s217 + $0x640] sm:$0xff]
        %v473 = vld [vmem:[%s217 + $0x648] sm:$0xff]
        %v474 = vld [vmem:[%s217 + $0x650] sm:$0xff]
        %v475 = vld [vmem:[%s217 + $0x658] sm:$0xff]
        %v476 = vld [vmem:[%s217 + $0x660] sm:$0xff]
        %v477 = vld [vmem:[%s217 + $0x668] sm:$0xff]
        %v478 = vld [vmem:[%s217 + $0x670] sm:$0xff]
        %v479 = vld [vmem:[%s217 + $0x678] sm:$0xff]
        %v480 = vld [vmem:[%s217 + $0x680] sm:$0xff]
        %v481 = vld [vmem:[%s217 + $0x688] sm:$0xff]
        %v482 = vld [vmem:[%s217 + $0x690] sm:$0xff]
        %v483 = vld [vmem:[%s217 + $0x698] sm:$0xff]
        %v484 = vld [vmem:[%s227] sm:$0xff]
        %v485 = vld [vmem:[%s227 + $0x8] sm:$0xff]
        %v486 = vld [vmem:[%s227 + $0x10] sm:$0xff]
        %v487 = vld [vmem:[%s227 + $0x18] sm:$0xff]
        %v488 = vld [vmem:[%s227 + $0x20] sm:$0xff]
        %v489 = vld [vmem:[%s227 + $0x28] sm:$0xff]
        %v490 = vld [vmem:[%s227 + $0x30] sm:$0xff]
        %v491 = vld [vmem:[%s227 + $0x38] sm:$0xff]
        %v492 = vld [vmem:[%s227 + $0x40] sm:$0xff]
        %v493 = vld [vmem:[%s227 + $0x48] sm:$0xff]
        %v494 = vld [vmem:[%s227 + $0x50] sm:$0xff]
        %v495 = vld [vmem:[%s227 + $0x58] sm:$0xff]
        %v496 = vld [vmem:[%s227 + $0x60] sm:$0xff]
        %v497 = vld [vmem:[%s227 + $0x68] sm:$0xff]
        %v498 = vld [vmem:[%s227 + $0x70] sm:$0xff]
        %v499 = vld [vmem:[%s227 + $0x78] sm:$0xff]
        %v500 = vld [vmem:[%s227 + $0x80] sm:$0xff]
        %v501 = vld [vmem:[%s227 + $0x88] sm:$0xff]
        %v502 = vld [vmem:[%s227 + $0x90] sm:$0xff]
        %v503 = vld [vmem:[%s227 + $0x98] sm:$0xff]
        %v504 = vld [vmem:[%s227 + $0xa0] sm:$0xff]
        %v505 = vld [vmem:[%s227 + $0xa8] sm:$0xff]
        %v506 = vld [vmem:[%s227 + $0xb0] sm:$0xff]
        %v507 = vld [vmem:[%s227 + $0xb8] sm:$0xff]
        %v508 = vld [vmem:[%s227 + $0xc0] sm:$0xff]
        %v509 = vld [vmem:[%s227 + $0xc8] sm:$0xff]
        %v510 = vld [vmem:[%s227 + $0xd0] sm:$0xff]
        %v511 = vld [vmem:[%s227 + $0xd8] sm:$0xff]
        %v512 = vld [vmem:[%s227 + $0xe0] sm:$0xff]
        %v513 = vld [vmem:[%s227 + $0xe8] sm:$0xff]
        %v514 = vld [vmem:[%s227 + $0xf0] sm:$0xff]
        %v515 = vld [vmem:[%s227 + $0xf8] sm:$0xff]
        %v516 = vld [vmem:[%s227 + $0x100] sm:$0xff]
        %v517 = vld [vmem:[%s227 + $0x108] sm:$0xff]
        %v518 = vld [vmem:[%s227 + $0x110] sm:$0xff]
        %v519 = vld [vmem:[%s227 + $0x118] sm:$0xff]
        %v520 = vld [vmem:[%s227 + $0x120] sm:$0xff]
        %v521 = vld [vmem:[%s227 + $0x128] sm:$0xff]
        %v522 = vld [vmem:[%s227 + $0x130] sm:$0xff]
        %v523 = vld [vmem:[%s227 + $0x138] sm:$0xff]
        %v524 = vld [vmem:[%s227 + $0x140] sm:$0xff]
        %v525 = vld [vmem:[%s227 + $0x148] sm:$0xff]
        %v526 = vld [vmem:[%s227 + $0x150] sm:$0xff]
        %v527 = vld [vmem:[%s227 + $0x158] sm:$0xff]
        %v528 = vld [vmem:[%s227 + $0x160] sm:$0xff]
        %v529 = vld [vmem:[%s227 + $0x168] sm:$0xff]
        %v530 = vld [vmem:[%s227 + $0x170] sm:$0xff]
        %v531 = vld [vmem:[%s227 + $0x178] sm:$0xff]
        %v532 = vld [vmem:[%s227 + $0x180] sm:$0xff]
        %v533 = vld [vmem:[%s227 + $0x188] sm:$0xff]
        %v534 = vld [vmem:[%s227 + $0x190] sm:$0xff]
        %v535 = vld [vmem:[%s227 + $0x198] sm:$0xff]
        %v536 = vld [vmem:[%s227 + $0x1a0] sm:$0xff]
        %v537 = vld [vmem:[%s227 + $0x1a8] sm:$0xff]
        %v538 = vld [vmem:[%s227 + $0x1b0] sm:$0xff]
        %v539 = vld [vmem:[%s227 + $0x1b8] sm:$0xff]
        %v540 = vld [vmem:[%s227 + $0x1c0] sm:$0xff]
        %v541 = vld [vmem:[%s227 + $0x1c8] sm:$0xff]
        %v542 = vld [vmem:[%s227 + $0x1d0] sm:$0xff]
        %v543 = vld [vmem:[%s227 + $0x1d8] sm:$0xff]
        %v544 = vld [vmem:[%s227 + $0x1e0] sm:$0xff]
        %v545 = vld [vmem:[%s227 + $0x1e8] sm:$0xff]
        %v546 = vld [vmem:[%s227 + $0x1f0] sm:$0xff]
        %v547 = vld [vmem:[%s227 + $0x1f8] sm:$0xff]
        %v548 = vld [vmem:[%s227 + $0x200] sm:$0xff]
        %v549 = vld [vmem:[%s227 + $0x208] sm:$0xff]
        %v550 = vld [vmem:[%s227 + $0x210] sm:$0xff]
        %v551 = vld [vmem:[%s227 + $0x218] sm:$0xff]
        %v552 = vld [vmem:[%s227 + $0x220] sm:$0xff]
        %v553 = vld [vmem:[%s227 + $0x228] sm:$0xff]
        %v554 = vld [vmem:[%s227 + $0x230] sm:$0xff]
        %v555 = vld [vmem:[%s227 + $0x238] sm:$0xff]
        %v556 = vld [vmem:[%s227 + $0x240] sm:$0xff]
        %v557 = vld [vmem:[%s227 + $0x248] sm:$0xff]
        %v558 = vld [vmem:[%s227 + $0x250] sm:$0xff]
        %v559 = vld [vmem:[%s227 + $0x258] sm:$0xff]
        %v560 = vld [vmem:[%s227 + $0x260] sm:$0xff]
        %v561 = vld [vmem:[%s227 + $0x268] sm:$0xff]
        %v562 = vld [vmem:[%s227 + $0x270] sm:$0xff]
        %v563 = vld [vmem:[%s227 + $0x278] sm:$0xff]
        %v564 = vld [vmem:[%s227 + $0x280] sm:$0xff]
        %v565 = vld [vmem:[%s227 + $0x288] sm:$0xff]
        %v566 = vld [vmem:[%s227 + $0x290] sm:$0xff]
        %v567 = vld [vmem:[%s227 + $0x298] sm:$0xff]
        %v568 = vld [vmem:[%s227 + $0x2a0] sm:$0xff]
        %v569 = vld [vmem:[%s227 + $0x2a8] sm:$0xff]
        %v570 = vld [vmem:[%s227 + $0x2b0] sm:$0xff]
        %v571 = vld [vmem:[%s227 + $0x2b8] sm:$0xff]
        %v572 = vld [vmem:[%s227 + $0x2c0] sm:$0xff]
        %v573 = vld [vmem:[%s227 + $0x2c8] sm:$0xff]
        %v574 = vld [vmem:[%s227 + $0x2d0] sm:$0xff]
        %v575 = vld [vmem:[%s227 + $0x2d8] sm:$0xff]
        %v576 = vld [vmem:[%s227 + $0x2e0] sm:$0xff]
        %v577 = vld [vmem:[%s227 + $0x2e8] sm:$0xff]
        %v578 = vld [vmem:[%s227 + $0x2f0] sm:$0xff]
        %v579 = vld [vmem:[%s227 + $0x2f8] sm:$0xff]
        %v580 = vld [vmem:[%s227 + $0x300] sm:$0xff]
        %v581 = vld [vmem:[%s227 + $0x308] sm:$0xff]
        %v582 = vld [vmem:[%s227 + $0x310] sm:$0xff]
        %v583 = vld [vmem:[%s227 + $0x318] sm:$0xff]
        %v584 = vld [vmem:[%s227 + $0x320] sm:$0xff]
        %v585 = vld [vmem:[%s227 + $0x328] sm:$0xff]
        %v586 = vld [vmem:[%s227 + $0x330] sm:$0xff]
        %v587 = vld [vmem:[%s227 + $0x338] sm:$0xff]
        %v588 = vld [vmem:[%s227 + $0x340] sm:$0xff]
        %v589 = vld [vmem:[%s227 + $0x348] sm:$0xff]
        %v590 = vld [vmem:[%s227 + $0x350] sm:$0xff]
        %v591 = vld [vmem:[%s227 + $0x358] sm:$0xff]
        %v592 = vld [vmem:[%s227 + $0x360] sm:$0xff]
        %v593 = vld [vmem:[%s227 + $0x368] sm:$0xff]
        %v594 = vld [vmem:[%s227 + $0x370] sm:$0xff]
        %v595 = vld [vmem:[%s227 + $0x378] sm:$0xff]
        %v596 = vld [vmem:[%s227 + $0x380] sm:$0xff]
        %v597 = vld [vmem:[%s227 + $0x388] sm:$0xff]
        %v598 = vld [vmem:[%s227 + $0x390] sm:$0xff]
        %v599 = vld [vmem:[%s227 + $0x398] sm:$0xff]
        %v600 = vld [vmem:[%s227 + $0x3a0] sm:$0xff]
        %v601 = vld [vmem:[%s227 + $0x3a8] sm:$0xff]
        %v602 = vld [vmem:[%s227 + $0x3b0] sm:$0xff]
        %v603 = vld [vmem:[%s227 + $0x3b8] sm:$0xff]
        %v604 = vld [vmem:[%s227 + $0x3c0] sm:$0xff]
        %v605 = vld [vmem:[%s227 + $0x3c8] sm:$0xff]
        %v606 = vld [vmem:[%s227 + $0x3d0] sm:$0xff]
        %v607 = vld [vmem:[%s227 + $0x3d8] sm:$0xff]
        %v608 = vld [vmem:[%s227 + $0x3e0] sm:$0xff]
        %v609 = vld [vmem:[%s227 + $0x3e8] sm:$0xff]
        %v610 = vld [vmem:[%s227 + $0x3f0] sm:$0xff]
        %v611 = vld [vmem:[%s227 + $0x3f8] sm:$0xff]
        %v612 = vld [vmem:[%s227 + $0x400] sm:$0xff]
        %v613 = vld [vmem:[%s227 + $0x408] sm:$0xff]
        %v614 = vld [vmem:[%s227 + $0x410] sm:$0xff]
        %v615 = vld [vmem:[%s227 + $0x418] sm:$0xff]
        %v616 = vld [vmem:[%s227 + $0x420] sm:$0xff]
        %v617 = vld [vmem:[%s227 + $0x428] sm:$0xff]
        %v618 = vld [vmem:[%s227 + $0x430] sm:$0xff]
        %v619 = vld [vmem:[%s227 + $0x438] sm:$0xff]
        %v620 = vld [vmem:[%s227 + $0x440] sm:$0xff]
        %v621 = vld [vmem:[%s227 + $0x448] sm:$0xff]
        %v622 = vld [vmem:[%s227 + $0x450] sm:$0xff]
        %v623 = vld [vmem:[%s227 + $0x458] sm:$0xff]
        %v624 = vld [vmem:[%s227 + $0x460] sm:$0xff]
        %v625 = vld [vmem:[%s227 + $0x468] sm:$0xff]
        %v626 = vld [vmem:[%s227 + $0x470] sm:$0xff]
        %v627 = vld [vmem:[%s227 + $0x478] sm:$0xff]
        %v628 = vld [vmem:[%s227 + $0x480] sm:$0xff]
        %v629 = vld [vmem:[%s227 + $0x488] sm:$0xff]
        %v630 = vld [vmem:[%s227 + $0x490] sm:$0xff]
        %v631 = vld [vmem:[%s227 + $0x498] sm:$0xff]
        %v632 = vld [vmem:[%s227 + $0x4a0] sm:$0xff]
        %v633 = vld [vmem:[%s227 + $0x4a8] sm:$0xff]
        %v634 = vld [vmem:[%s227 + $0x4b0] sm:$0xff]
        %v635 = vld [vmem:[%s227 + $0x4b8] sm:$0xff]
        %v636 = vld [vmem:[%s227 + $0x4c0] sm:$0xff]
        %v637 = vld [vmem:[%s227 + $0x4c8] sm:$0xff]
        %v638 = vld [vmem:[%s227 + $0x4d0] sm:$0xff]
        %v639 = vld [vmem:[%s227 + $0x4d8] sm:$0xff]
        %v640 = vld [vmem:[%s227 + $0x4e0] sm:$0xff]
        %v641 = vld [vmem:[%s227 + $0x4e8] sm:$0xff]
        %v642 = vld [vmem:[%s227 + $0x4f0] sm:$0xff]
        %v643 = vld [vmem:[%s227 + $0x4f8] sm:$0xff]
        %v644 = vld [vmem:[%s227 + $0x500] sm:$0xff]
        %v645 = vld [vmem:[%s227 + $0x508] sm:$0xff]
        %v646 = vld [vmem:[%s227 + $0x510] sm:$0xff]
        %v647 = vld [vmem:[%s227 + $0x518] sm:$0xff]
        %v648 = vld [vmem:[%s227 + $0x520] sm:$0xff]
        %v649 = vld [vmem:[%s227 + $0x528] sm:$0xff]
        %v650 = vld [vmem:[%s227 + $0x530] sm:$0xff]
        %v651 = vld [vmem:[%s227 + $0x538] sm:$0xff]
        %v652 = vld [vmem:[%s227 + $0x540] sm:$0xff]
        %v653 = vld [vmem:[%s227 + $0x548] sm:$0xff]
        %v654 = vld [vmem:[%s227 + $0x550] sm:$0xff]
        %v655 = vld [vmem:[%s227 + $0x558] sm:$0xff]
        %v656 = vld [vmem:[%s227 + $0x560] sm:$0xff]
        %v657 = vld [vmem:[%s227 + $0x568] sm:$0xff]
        %v658 = vld [vmem:[%s227 + $0x570] sm:$0xff]
        %v659 = vld [vmem:[%s227 + $0x578] sm:$0xff]
        %v660 = vld [vmem:[%s227 + $0x580] sm:$0xff]
        %v661 = vld [vmem:[%s227 + $0x588] sm:$0xff]
        %v662 = vld [vmem:[%s227 + $0x590] sm:$0xff]
        %v663 = vld [vmem:[%s227 + $0x598] sm:$0xff]
        %v664 = vld [vmem:[%s227 + $0x5a0] sm:$0xff]
        %v665 = vld [vmem:[%s227 + $0x5a8] sm:$0xff]
        %v666 = vld [vmem:[%s227 + $0x5b0] sm:$0xff]
        %v667 = vld [vmem:[%s227 + $0x5b8] sm:$0xff]
        %v668 = vld [vmem:[%s227 + $0x5c0] sm:$0xff]
        %v669 = vld [vmem:[%s227 + $0x5c8] sm:$0xff]
        %v670 = vld [vmem:[%s227 + $0x5d0] sm:$0xff]
        %v671 = vld [vmem:[%s227 + $0x5d8] sm:$0xff]
        %v672 = vld [vmem:[%s227 + $0x5e0] sm:$0xff]
        %v673 = vld [vmem:[%s227 + $0x5e8] sm:$0xff]
        %v674 = vld [vmem:[%s227 + $0x5f0] sm:$0xff]
        %v675 = vld [vmem:[%s227 + $0x5f8] sm:$0xff]
        %v676 = vld [vmem:[%s227 + $0x600] sm:$0xff]
        %v677 = vld [vmem:[%s227 + $0x608] sm:$0xff]
        %v678 = vld [vmem:[%s227 + $0x610] sm:$0xff]
        %v679 = vld [vmem:[%s227 + $0x618] sm:$0xff]
        %v680 = vld [vmem:[%s227 + $0x620] sm:$0xff]
        %v681 = vld [vmem:[%s227 + $0x628] sm:$0xff]
        %v682 = vld [vmem:[%s227 + $0x630] sm:$0xff]
        %v683 = vld [vmem:[%s227 + $0x638] sm:$0xff]
        %v684 = vld [vmem:[%s227 + $0x640] sm:$0xff]
        %v685 = vld [vmem:[%s227 + $0x648] sm:$0xff]
        %v686 = vld [vmem:[%s227 + $0x650] sm:$0xff]
        %v687 = vld [vmem:[%s227 + $0x658] sm:$0xff]
        %v688 = vld [vmem:[%s227 + $0x660] sm:$0xff]
        %v689 = vld [vmem:[%s227 + $0x668] sm:$0xff]
        %v690 = vld [vmem:[%s227 + $0x670] sm:$0xff]
        %v691 = vld [vmem:[%s227 + $0x678] sm:$0xff]
        %v692 = vld [vmem:[%s227 + $0x680] sm:$0xff]
        %v693 = vld [vmem:[%s227 + $0x688] sm:$0xff]
        %v694 = vld [vmem:[%s227 + $0x690] sm:$0xff]
        %v695 = vld [vmem:[%s227 + $0x698] sm:$0xff]
        %v696 = vsub.f32 %v272, %v484
        %v697 = vsub.f32 %v273, %v485
        %v698 = vsub.f32 %v274, %v486
        %v699 = vsub.f32 %v275, %v487
        %v700 = vsub.f32 %v276, %v488
        %v701 = vsub.f32 %v277, %v489
        %v702 = vsub.f32 %v278, %v490
        %v703 = vsub.f32 %v279, %v491
        %v704 = vsub.f32 %v280, %v492
        %v705 = vsub.f32 %v281, %v493
        %v706 = vsub.f32 %v282, %v494
        %v707 = vsub.f32 %v283, %v495
        %v708 = vsub.f32 %v284, %v496
        %v709 = vsub.f32 %v285, %v497
        %v710 = vsub.f32 %v286, %v498
        %v711 = vsub.f32 %v287, %v499
        %v712 = vsub.f32 %v288, %v500
        %v713 = vsub.f32 %v289, %v501
        %v714 = vsub.f32 %v290, %v502
        %v715 = vsub.f32 %v291, %v503
        %v716 = vsub.f32 %v292, %v504
        %v717 = vsub.f32 %v293, %v505
        %v718 = vsub.f32 %v294, %v506
        %v719 = vsub.f32 %v295, %v507
        %v720 = vsub.f32 %v296, %v508
        %v721 = vsub.f32 %v297, %v509
        %v722 = vsub.f32 %v298, %v510
        %v723 = vsub.f32 %v299, %v511
        %v724 = vsub.f32 %v300, %v512
        %v725 = vsub.f32 %v301, %v513
        %v726 = vsub.f32 %v302, %v514
        %v727 = vsub.f32 %v303, %v515
        %v728 = vsub.f32 %v304, %v516
        %v729 = vsub.f32 %v305, %v517
        %v730 = vsub.f32 %v306, %v518
        %v731 = vsub.f32 %v307, %v519
        %v732 = vsub.f32 %v308, %v520
        %v733 = vsub.f32 %v309, %v521
        %v734 = vsub.f32 %v310, %v522
        %v735 = vsub.f32 %v311, %v523
        %v736 = vsub.f32 %v312, %v524
        %v737 = vsub.f32 %v313, %v525
        %v738 = vsub.f32 %v314, %v526
        %v739 = vsub.f32 %v315, %v527
        %v740 = vsub.f32 %v316, %v528
        %v741 = vsub.f32 %v317, %v529
        %v742 = vsub.f32 %v318, %v530
        %v743 = vsub.f32 %v319, %v531
        %v744 = vsub.f32 %v320, %v532
        %v745 = vsub.f32 %v321, %v533
        %v746 = vsub.f32 %v322, %v534
        %v747 = vsub.f32 %v323, %v535
        %v748 = vsub.f32 %v324, %v536
        %v749 = vsub.f32 %v325, %v537
        %v750 = vsub.f32 %v326, %v538
        %v751 = vsub.f32 %v327, %v539
        %v752 = vsub.f32 %v328, %v540
        %v753 = vsub.f32 %v329, %v541
        %v754 = vsub.f32 %v330, %v542
        %v755 = vsub.f32 %v331, %v543
        %v756 = vsub.f32 %v332, %v544
        %v757 = vsub.f32 %v333, %v545
        %v758 = vsub.f32 %v334, %v546
        %v759 = vsub.f32 %v335, %v547
        %v760 = vsub.f32 %v336, %v548
        %v761 = vsub.f32 %v337, %v549
        %v762 = vsub.f32 %v338, %v550
        %v763 = vsub.f32 %v339, %v551
        %v764 = vsub.f32 %v340, %v552
        %v765 = vsub.f32 %v341, %v553
        %v766 = vsub.f32 %v342, %v554
        %v767 = vsub.f32 %v343, %v555
        %v768 = vsub.f32 %v344, %v556
        %v769 = vsub.f32 %v345, %v557
        %v770 = vsub.f32 %v346, %v558
        %v771 = vsub.f32 %v347, %v559
        %v772 = vsub.f32 %v348, %v560
        %v773 = vsub.f32 %v349, %v561
        %v774 = vsub.f32 %v350, %v562
        %v775 = vsub.f32 %v351, %v563
        %v776 = vsub.f32 %v352, %v564
        %v777 = vsub.f32 %v353, %v565
        %v778 = vsub.f32 %v354, %v566
        %v779 = vsub.f32 %v355, %v567
        %v780 = vsub.f32 %v356, %v568
        %v781 = vsub.f32 %v357, %v569
        %v782 = vsub.f32 %v358, %v570
        %v783 = vsub.f32 %v359, %v571
        %v784 = vsub.f32 %v360, %v572
        %v785 = vsub.f32 %v361, %v573
        %v786 = vsub.f32 %v362, %v574
        %v787 = vsub.f32 %v363, %v575
        %v788 = vsub.f32 %v364, %v576
        %v789 = vsub.f32 %v365, %v577
        %v790 = vsub.f32 %v366, %v578
        %v791 = vsub.f32 %v367, %v579
        %v792 = vsub.f32 %v368, %v580
        %v793 = vsub.f32 %v369, %v581
        %v794 = vsub.f32 %v370, %v582
        %v795 = vsub.f32 %v371, %v583
        %v796 = vsub.f32 %v372, %v584
        %v797 = vsub.f32 %v373, %v585
        %v798 = vsub.f32 %v374, %v586
        %v799 = vsub.f32 %v375, %v587
        %v800 = vsub.f32 %v376, %v588
        %v801 = vsub.f32 %v377, %v589
        %v802 = vsub.f32 %v378, %v590
        %v803 = vsub.f32 %v379, %v591
        %v804 = vsub.f32 %v380, %v592
        %v805 = vsub.f32 %v381, %v593
        %v806 = vsub.f32 %v382, %v594
        %v807 = vsub.f32 %v383, %v595
        %v808 = vsub.f32 %v384, %v596
        %v809 = vsub.f32 %v385, %v597
        %v810 = vsub.f32 %v386, %v598
        %v811 = vsub.f32 %v387, %v599
        %v812 = vsub.f32 %v388, %v600
        %v813 = vsub.f32 %v389, %v601
        %v814 = vsub.f32 %v390, %v602
        %v815 = vsub.f32 %v391, %v603
        %v816 = vsub.f32 %v392, %v604
        %v817 = vsub.f32 %v393, %v605
        %v818 = vsub.f32 %v394, %v606
        %v819 = vsub.f32 %v395, %v607
        %v820 = vsub.f32 %v396, %v608
        %v821 = vsub.f32 %v397, %v609
        %v822 = vsub.f32 %v398, %v610
        %v823 = vsub.f32 %v399, %v611
        %v824 = vsub.f32 %v400, %v612
        %v825 = vsub.f32 %v401, %v613
        %v826 = vsub.f32 %v402, %v614
        %v827 = vsub.f32 %v403, %v615
        %v828 = vsub.f32 %v404, %v616
        %v829 = vsub.f32 %v405, %v617
        %v830 = vsub.f32 %v406, %v618
        %v831 = vsub.f32 %v407, %v619
        %v832 = vsub.f32 %v408, %v620
        %v833 = vsub.f32 %v409, %v621
        %v834 = vsub.f32 %v410, %v622
        %v835 = vsub.f32 %v411, %v623
        %v836 = vsub.f32 %v412, %v624
        %v837 = vsub.f32 %v413, %v625
        %v838 = vsub.f32 %v414, %v626
        %v839 = vsub.f32 %v415, %v627
        %v840 = vsub.f32 %v416, %v628
        %v841 = vsub.f32 %v417, %v629
        %v842 = vsub.f32 %v418, %v630
        %v843 = vsub.f32 %v419, %v631
        %v844 = vsub.f32 %v420, %v632
        %v845 = vsub.f32 %v421, %v633
        %v846 = vsub.f32 %v422, %v634
        %v847 = vsub.f32 %v423, %v635
        %v848 = vsub.f32 %v424, %v636
        %v849 = vsub.f32 %v425, %v637
        %v850 = vsub.f32 %v426, %v638
        %v851 = vsub.f32 %v427, %v639
        %v852 = vsub.f32 %v428, %v640
        %v853 = vsub.f32 %v429, %v641
        %v854 = vsub.f32 %v430, %v642
        %v855 = vsub.f32 %v431, %v643
        %v856 = vsub.f32 %v432, %v644
        %v857 = vsub.f32 %v433, %v645
        %v858 = vsub.f32 %v434, %v646
        %v859 = vsub.f32 %v435, %v647
        %v860 = vsub.f32 %v436, %v648
        %v861 = vsub.f32 %v437, %v649
        %v862 = vsub.f32 %v438, %v650
        %v863 = vsub.f32 %v439, %v651
        %v864 = vsub.f32 %v440, %v652
        %v865 = vsub.f32 %v441, %v653
        %v866 = vsub.f32 %v442, %v654
        %v867 = vsub.f32 %v443, %v655
        %v868 = vsub.f32 %v444, %v656
        %v869 = vsub.f32 %v445, %v657
        %v870 = vsub.f32 %v446, %v658
        %v871 = vsub.f32 %v447, %v659
        %v872 = vsub.f32 %v448, %v660
        %v873 = vsub.f32 %v449, %v661
        %v874 = vsub.f32 %v450, %v662
        %v875 = vsub.f32 %v451, %v663
        %v876 = vsub.f32 %v452, %v664
        %v877 = vsub.f32 %v453, %v665
        %v878 = vsub.f32 %v454, %v666
        %v879 = vsub.f32 %v455, %v667
        %v880 = vsub.f32 %v456, %v668
        %v881 = vsub.f32 %v457, %v669
        %v882 = vsub.f32 %v458, %v670
        %v883 = vsub.f32 %v459, %v671
        %v884 = vsub.f32 %v460, %v672
        %v885 = vsub.f32 %v461, %v673
        %v886 = vsub.f32 %v462, %v674
        %v887 = vsub.f32 %v463, %v675
        %v888 = vsub.f32 %v464, %v676
        %v889 = vsub.f32 %v465, %v677
        %v890 = vsub.f32 %v466, %v678
        %v891 = vsub.f32 %v467, %v679
        %v892 = vsub.f32 %v468, %v680
        %v893 = vsub.f32 %v469, %v681
        %v894 = vsub.f32 %v470, %v682
        %v895 = vsub.f32 %v471, %v683
        %v896 = vsub.f32 %v472, %v684
        %v897 = vsub.f32 %v473, %v685
        %v898 = vsub.f32 %v474, %v686
        %v899 = vsub.f32 %v475, %v687
        %v900 = vsub.f32 %v476, %v688
        %v901 = vsub.f32 %v477, %v689
        %v902 = vsub.f32 %v478, %v690
        %v903 = vsub.f32 %v479, %v691
        %v904 = vsub.f32 %v480, %v692
        %v905 = vsub.f32 %v481, %v693
        %v906 = vsub.f32 %v482, %v694
        %v907 = vsub.f32 %v483, %v695
        %v908 = vand.u32 2147483647, %v696
        %v909 = vand.u32 2147483647, %v697
        %v910 = vand.u32 2147483647, %v698
        %v911 = vand.u32 2147483647, %v699
        %v912 = vand.u32 2147483647, %v700
        %v913 = vand.u32 2147483647, %v701
        %v914 = vand.u32 2147483647, %v702
        %v915 = vand.u32 2147483647, %v703
        %v916 = vand.u32 2147483647, %v704
        %v917 = vand.u32 2147483647, %v705
        %v918 = vand.u32 2147483647, %v706
        %v919 = vand.u32 2147483647, %v707
        %v920 = vand.u32 2147483647, %v708
        %v921 = vand.u32 2147483647, %v709
        %v922 = vand.u32 2147483647, %v710
        %v923 = vand.u32 2147483647, %v711
        %v924 = vand.u32 2147483647, %v712
        %v925 = vand.u32 2147483647, %v713
        %v926 = vand.u32 2147483647, %v714
        %v927 = vand.u32 2147483647, %v715
        %v928 = vand.u32 2147483647, %v716
        %v929 = vand.u32 2147483647, %v717
        %v930 = vand.u32 2147483647, %v718
        %v931 = vand.u32 2147483647, %v719
        %v932 = vand.u32 2147483647, %v720
        %v933 = vand.u32 2147483647, %v721
        %v934 = vand.u32 2147483647, %v722
        %v935 = vand.u32 2147483647, %v723
        %v936 = vand.u32 2147483647, %v724
        %v937 = vand.u32 2147483647, %v725
        %v938 = vand.u32 2147483647, %v726
        %v939 = vand.u32 2147483647, %v727
        %v940 = vand.u32 2147483647, %v728
        %v941 = vand.u32 2147483647, %v729
        %v942 = vand.u32 2147483647, %v730
        %v943 = vand.u32 2147483647, %v731
        %v944 = vand.u32 2147483647, %v732
        %v945 = vand.u32 2147483647, %v733
        %v946 = vand.u32 2147483647, %v734
        %v947 = vand.u32 2147483647, %v735
        %v948 = vand.u32 2147483647, %v736
        %v949 = vand.u32 2147483647, %v737
        %v950 = vand.u32 2147483647, %v738
        %v951 = vand.u32 2147483647, %v739
        %v952 = vand.u32 2147483647, %v740
        %v953 = vand.u32 2147483647, %v741
        %v954 = vand.u32 2147483647, %v742
        %v955 = vand.u32 2147483647, %v743
        %v956 = vand.u32 2147483647, %v744
        %v957 = vand.u32 2147483647, %v745
        %v958 = vand.u32 2147483647, %v746
        %v959 = vand.u32 2147483647, %v747
        %v960 = vand.u32 2147483647, %v748
        %v961 = vand.u32 2147483647, %v749
        %v962 = vand.u32 2147483647, %v750
        %v963 = vand.u32 2147483647, %v751
        %v964 = vand.u32 2147483647, %v752
        %v965 = vand.u32 2147483647, %v753
        %v966 = vand.u32 2147483647, %v754
        %v967 = vand.u32 2147483647, %v755
        %v968 = vand.u32 2147483647, %v756
        %v969 = vand.u32 2147483647, %v757
        %v970 = vand.u32 2147483647, %v758
        %v971 = vand.u32 2147483647, %v759
        %v972 = vand.u32 2147483647, %v760
        %v973 = vand.u32 2147483647, %v761
        %v974 = vand.u32 2147483647, %v762
        %v975 = vand.u32 2147483647, %v763
        %v976 = vand.u32 2147483647, %v764
        %v977 = vand.u32 2147483647, %v765
        %v978 = vand.u32 2147483647, %v766
        %v979 = vand.u32 2147483647, %v767
        %v980 = vand.u32 2147483647, %v768
        %v981 = vand.u32 2147483647, %v769
        %v982 = vand.u32 2147483647, %v770
        %v983 = vand.u32 2147483647, %v771
        %v984 = vand.u32 2147483647, %v772
        %v985 = vand.u32 2147483647, %v773
        %v986 = vand.u32 2147483647, %v774
        %v987 = vand.u32 2147483647, %v775
        %v988 = vand.u32 2147483647, %v776
        %v989 = vand.u32 2147483647, %v777
        %v990 = vand.u32 2147483647, %v778
        %v991 = vand.u32 2147483647, %v779
        %v992 = vand.u32 2147483647, %v780
        %v993 = vand.u32 2147483647, %v781
        %v994 = vand.u32 2147483647, %v782
        %v995 = vand.u32 2147483647, %v783
        %v996 = vand.u32 2147483647, %v784
        %v997 = vand.u32 2147483647, %v785
        %v998 = vand.u32 2147483647, %v786
        %v999 = vand.u32 2147483647, %v787
        %v1000 = vand.u32 2147483647, %v788
        %v1001 = vand.u32 2147483647, %v789
        %v1002 = vand.u32 2147483647, %v790
        %v1003 = vand.u32 2147483647, %v791
        %v1004 = vand.u32 2147483647, %v792
        %v1005 = vand.u32 2147483647, %v793
        %v1006 = vand.u32 2147483647, %v794
        %v1007 = vand.u32 2147483647, %v795
        %v1008 = vand.u32 2147483647, %v796
        %v1009 = vand.u32 2147483647, %v797
        %v1010 = vand.u32 2147483647, %v798
        %v1011 = vand.u32 2147483647, %v799
        %v1012 = vand.u32 2147483647, %v800
        %v1013 = vand.u32 2147483647, %v801
        %v1014 = vand.u32 2147483647, %v802
        %v1015 = vand.u32 2147483647, %v803
        %v1016 = vand.u32 2147483647, %v804
        %v1017 = vand.u32 2147483647, %v805
        %v1018 = vand.u32 2147483647, %v806
        %v1019 = vand.u32 2147483647, %v807
        %v1020 = vand.u32 2147483647, %v808
        %v1021 = vand.u32 2147483647, %v809
        %v1022 = vand.u32 2147483647, %v810
        %v1023 = vand.u32 2147483647, %v811
        %v1024 = vand.u32 2147483647, %v812
        %v1025 = vand.u32 2147483647, %v813
        %v1026 = vand.u32 2147483647, %v814
        %v1027 = vand.u32 2147483647, %v815
        %v1028 = vand.u32 2147483647, %v816
        %v1029 = vand.u32 2147483647, %v817
        %v1030 = vand.u32 2147483647, %v818
        %v1031 = vand.u32 2147483647, %v819
        %v1032 = vand.u32 2147483647, %v820
        %v1033 = vand.u32 2147483647, %v821
        %v1034 = vand.u32 2147483647, %v822
        %v1035 = vand.u32 2147483647, %v823
        %v1036 = vand.u32 2147483647, %v824
        %v1037 = vand.u32 2147483647, %v825
        %v1038 = vand.u32 2147483647, %v826
        %v1039 = vand.u32 2147483647, %v827
        %v1040 = vand.u32 2147483647, %v828
        %v1041 = vand.u32 2147483647, %v829
        %v1042 = vand.u32 2147483647, %v830
        %v1043 = vand.u32 2147483647, %v831
        %v1044 = vand.u32 2147483647, %v832
        %v1045 = vand.u32 2147483647, %v833
        %v1046 = vand.u32 2147483647, %v834
        %v1047 = vand.u32 2147483647, %v835
        %v1048 = vand.u32 2147483647, %v836
        %v1049 = vand.u32 2147483647, %v837
        %v1050 = vand.u32 2147483647, %v838
        %v1051 = vand.u32 2147483647, %v839
        %v1052 = vand.u32 2147483647, %v840
        %v1053 = vand.u32 2147483647, %v841
        %v1054 = vand.u32 2147483647, %v842
        %v1055 = vand.u32 2147483647, %v843
        %v1056 = vand.u32 2147483647, %v844
        %v1057 = vand.u32 2147483647, %v845
        %v1058 = vand.u32 2147483647, %v846
        %v1059 = vand.u32 2147483647, %v847
        %v1060 = vand.u32 2147483647, %v848
        %v1061 = vand.u32 2147483647, %v849
        %v1062 = vand.u32 2147483647, %v850
        %v1063 = vand.u32 2147483647, %v851
        %v1064 = vand.u32 2147483647, %v852
        %v1065 = vand.u32 2147483647, %v853
        %v1066 = vand.u32 2147483647, %v854
        %v1067 = vand.u32 2147483647, %v855
        %v1068 = vand.u32 2147483647, %v856
        %v1069 = vand.u32 2147483647, %v857
        %v1070 = vand.u32 2147483647, %v858
        %v1071 = vand.u32 2147483647, %v859
        %v1072 = vand.u32 2147483647, %v860
        %v1073 = vand.u32 2147483647, %v861
        %v1074 = vand.u32 2147483647, %v862
        %v1075 = vand.u32 2147483647, %v863
        %v1076 = vand.u32 2147483647, %v864
        %v1077 = vand.u32 2147483647, %v865
        %v1078 = vand.u32 2147483647, %v866
        %v1079 = vand.u32 2147483647, %v867
        %v1080 = vand.u32 2147483647, %v868
        %v1081 = vand.u32 2147483647, %v869
        %v1082 = vand.u32 2147483647, %v870
        %v1083 = vand.u32 2147483647, %v871
        %v1084 = vand.u32 2147483647, %v872
        %v1085 = vand.u32 2147483647, %v873
        %v1086 = vand.u32 2147483647, %v874
        %v1087 = vand.u32 2147483647, %v875
        %v1088 = vand.u32 2147483647, %v876
        %v1089 = vand.u32 2147483647, %v877
        %v1090 = vand.u32 2147483647, %v878
        %v1091 = vand.u32 2147483647, %v879
        %v1092 = vand.u32 2147483647, %v880
        %v1093 = vand.u32 2147483647, %v881
        %v1094 = vand.u32 2147483647, %v882
        %v1095 = vand.u32 2147483647, %v883
        %v1096 = vand.u32 2147483647, %v884
        %v1097 = vand.u32 2147483647, %v885
        %v1098 = vand.u32 2147483647, %v886
        %v1099 = vand.u32 2147483647, %v887
        %v1100 = vand.u32 2147483647, %v888
        %v1101 = vand.u32 2147483647, %v889
        %v1102 = vand.u32 2147483647, %v890
        %v1103 = vand.u32 2147483647, %v891
        %v1104 = vand.u32 2147483647, %v892
        %v1105 = vand.u32 2147483647, %v893
        %v1106 = vand.u32 2147483647, %v894
        %v1107 = vand.u32 2147483647, %v895
        %v1108 = vand.u32 2147483647, %v896
        %v1109 = vand.u32 2147483647, %v897
        %v1110 = vand.u32 2147483647, %v898
        %v1111 = vand.u32 2147483647, %v899
        %v1112 = vand.u32 2147483647, %v900
        %v1113 = vand.u32 2147483647, %v901
        %v1114 = vand.u32 2147483647, %v902
        %v1115 = vand.u32 2147483647, %v903
        %v1116 = vand.u32 2147483647, %v904
        %v1117 = vand.u32 2147483647, %v905
        %v1118 = vand.u32 2147483647, %v906
        %v1119 = vand.u32 2147483647, %v907
        %s1120 = smul.u32 %s24, 4
        %s1121 = sadd.s32 %s1120, %s25
        %s1122 = sadd.s32 %s1121, 1
        %s1123 = smul.u32 %s1122, 1696
        %p1124 = scmp.le.s32.totalorder %s1123, 5120
        // Predicated region
        $region41: #{tpu_custom_call.1} parent=27 // pred_check
          %p1125 = pneg %p1124
        $region42: #{tpu_custom_call.1} parent=27 // pred_check_branch
          %1127 = sbr.rel (%p1125) target = $region44
        $region43: #{tpu_custom_call.1} parent=27 // pred_region
          %v1128 = vld [vmem:[#allocation7] sm:$0xff]
          %v1129 = vadd.f32 %v908, %v909
          %v1130 = vadd.f32 %v1129, %v910
          %v1131 = vadd.f32 %v1130, %v911
          %v1132 = vadd.f32 %v1131, %v912
          %v1133 = vadd.f32 %v1132, %v913
          %v1134 = vadd.f32 %v1133, %v914
          %v1135 = vadd.f32 %v1134, %v915
          %v1136 = vadd.f32 %v1135, %v916
          %v1137 = vadd.f32 %v1136, %v917
          %v1138 = vadd.f32 %v1137, %v918
          %v1139 = vadd.f32 %v1138, %v919
          %v1140 = vadd.f32 %v1139, %v920
          %v1141 = vadd.f32 %v1140, %v921
          %v1142 = vadd.f32 %v1141, %v922
          %v1143 = vadd.f32 %v1142, %v923
          %v1144 = vadd.f32 %v1143, %v924
          %v1145 = vadd.f32 %v1144, %v925
          %v1146 = vadd.f32 %v1145, %v926
          %v1147 = vadd.f32 %v1146, %v927
          %v1148 = vadd.f32 %v1147, %v928
          %v1149 = vadd.f32 %v1148, %v929
          %v1150 = vadd.f32 %v1149, %v930
          %v1151 = vadd.f32 %v1150, %v931
          %v1152 = vadd.f32 %v1151, %v932
          %v1153 = vadd.f32 %v1152, %v933
          %v1154 = vadd.f32 %v1153, %v934
          %v1155 = vadd.f32 %v1154, %v935
          %v1156 = vadd.f32 %v1155, %v936
          %v1157 = vadd.f32 %v1156, %v937
          %v1158 = vadd.f32 %v1157, %v938
          %v1159 = vadd.f32 %v1158, %v939
          %v1160 = vadd.f32 %v1159, %v940
          %v1161 = vadd.f32 %v1160, %v941
          %v1162 = vadd.f32 %v1161, %v942
          %v1163 = vadd.f32 %v1162, %v943
          %v1164 = vadd.f32 %v1163, %v944
          %v1165 = vadd.f32 %v1164, %v945
          %v1166 = vadd.f32 %v1165, %v946
          %v1167 = vadd.f32 %v1166, %v947
          %v1168 = vadd.f32 %v1167, %v948
          %v1169 = vadd.f32 %v1168, %v949
          %v1170 = vadd.f32 %v1169, %v950
          %v1171 = vadd.f32 %v1170, %v951
          %v1172 = vadd.f32 %v1171, %v952
          %v1173 = vadd.f32 %v1172, %v953
          %v1174 = vadd.f32 %v1173, %v954
          %v1175 = vadd.f32 %v1174, %v955
          %v1176 = vadd.f32 %v1175, %v956
          %v1177 = vadd.f32 %v1176, %v957
          %v1178 = vadd.f32 %v1177, %v958
          %v1179 = vadd.f32 %v1178, %v959
          %v1180 = vadd.f32 %v1179, %v960
          %v1181 = vadd.f32 %v1180, %v961
          %v1182 = vadd.f32 %v1181, %v962
          %v1183 = vadd.f32 %v1182, %v963
          %v1184 = vadd.f32 %v1183, %v964
          %v1185 = vadd.f32 %v1184, %v965
          %v1186 = vadd.f32 %v1185, %v966
          %v1187 = vadd.f32 %v1186, %v967
          %v1188 = vadd.f32 %v1187, %v968
          %v1189 = vadd.f32 %v1188, %v969
          %v1190 = vadd.f32 %v1189, %v970
          %v1191 = vadd.f32 %v1190, %v971
          %v1192 = vadd.f32 %v1191, %v972
          %v1193 = vadd.f32 %v1192, %v973
          %v1194 = vadd.f32 %v1193, %v974
          %v1195 = vadd.f32 %v1194, %v975
          %v1196 = vadd.f32 %v1195, %v976
          %v1197 = vadd.f32 %v1196, %v977
          %v1198 = vadd.f32 %v1197, %v978
          %v1199 = vadd.f32 %v1198, %v979
          %v1200 = vadd.f32 %v1199, %v980
          %v1201 = vadd.f32 %v1200, %v981
          %v1202 = vadd.f32 %v1201, %v982
          %v1203 = vadd.f32 %v1202, %v983
          %v1204 = vadd.f32 %v1203, %v984
          %v1205 = vadd.f32 %v1204, %v985
          %v1206 = vadd.f32 %v1205, %v986
          %v1207 = vadd.f32 %v1206, %v987
          %v1208 = vadd.f32 %v1207, %v988
          %v1209 = vadd.f32 %v1208, %v989
          %v1210 = vadd.f32 %v1209, %v990
          %v1211 = vadd.f32 %v1210, %v991
          %v1212 = vadd.f32 %v1211, %v992
          %v1213 = vadd.f32 %v1212, %v993
          %v1214 = vadd.f32 %v1213, %v994
          %v1215 = vadd.f32 %v1214, %v995
          %v1216 = vadd.f32 %v1215, %v996
          %v1217 = vadd.f32 %v1216, %v997
          %v1218 = vadd.f32 %v1217, %v998
          %v1219 = vadd.f32 %v1218, %v999
          %v1220 = vadd.f32 %v1219, %v1000
          %v1221 = vadd.f32 %v1220, %v1001
          %v1222 = vadd.f32 %v1221, %v1002
          %v1223 = vadd.f32 %v1222, %v1003
          %v1224 = vadd.f32 %v1223, %v1004
          %v1225 = vadd.f32 %v1224, %v1005
          %v1226 = vadd.f32 %v1225, %v1006
          %v1227 = vadd.f32 %v1226, %v1007
          %v1228 = vadd.f32 %v1227, %v1008
          %v1229 = vadd.f32 %v1228, %v1009
          %v1230 = vadd.f32 %v1229, %v1010
          %v1231 = vadd.f32 %v1230, %v1011
          %v1232 = vadd.f32 %v1231, %v1012
          %v1233 = vadd.f32 %v1232, %v1013
          %v1234 = vadd.f32 %v1233, %v1014
          %v1235 = vadd.f32 %v1234, %v1015
          %v1236 = vadd.f32 %v1235, %v1016
          %v1237 = vadd.f32 %v1236, %v1017
          %v1238 = vadd.f32 %v1237, %v1018
          %v1239 = vadd.f32 %v1238, %v1019
          %v1240 = vadd.f32 %v1239, %v1020
          %v1241 = vadd.f32 %v1240, %v1021
          %v1242 = vadd.f32 %v1241, %v1022
          %v1243 = vadd.f32 %v1242, %v1023
          %v1244 = vadd.f32 %v1243, %v1024
          %v1245 = vadd.f32 %v1244, %v1025
          %v1246 = vadd.f32 %v1245, %v1026
          %v1247 = vadd.f32 %v1246, %v1027
          %v1248 = vadd.f32 %v1247, %v1028
          %v1249 = vadd.f32 %v1248, %v1029
          %v1250 = vadd.f32 %v1249, %v1030
          %v1251 = vadd.f32 %v1250, %v1031
          %v1252 = vadd.f32 %v1251, %v1032
          %v1253 = vadd.f32 %v1252, %v1033
          %v1254 = vadd.f32 %v1253, %v1034
          %v1255 = vadd.f32 %v1254, %v1035
          %v1256 = vadd.f32 %v1255, %v1036
          %v1257 = vadd.f32 %v1256, %v1037
          %v1258 = vadd.f32 %v1257, %v1038
          %v1259 = vadd.f32 %v1258, %v1039
          %v1260 = vadd.f32 %v1259, %v1040
          %v1261 = vadd.f32 %v1260, %v1041
          %v1262 = vadd.f32 %v1261, %v1042
          %v1263 = vadd.f32 %v1262, %v1043
          %v1264 = vadd.f32 %v1263, %v1044
          %v1265 = vadd.f32 %v1264, %v1045
          %v1266 = vadd.f32 %v1265, %v1046
          %v1267 = vadd.f32 %v1266, %v1047
          %v1268 = vadd.f32 %v1267, %v1048
          %v1269 = vadd.f32 %v1268, %v1049
          %v1270 = vadd.f32 %v1269, %v1050
          %v1271 = vadd.f32 %v1270, %v1051
          %v1272 = vadd.f32 %v1271, %v1052
          %v1273 = vadd.f32 %v1272, %v1053
          %v1274 = vadd.f32 %v1273, %v1054
          %v1275 = vadd.f32 %v1274, %v1055
          %v1276 = vadd.f32 %v1275, %v1056
          %v1277 = vadd.f32 %v1276, %v1057
          %v1278 = vadd.f32 %v1277, %v1058
          %v1279 = vadd.f32 %v1278, %v1059
          %v1280 = vadd.f32 %v1279, %v1060
          %v1281 = vadd.f32 %v1280, %v1061
          %v1282 = vadd.f32 %v1281, %v1062
          %v1283 = vadd.f32 %v1282, %v1063
          %v1284 = vadd.f32 %v1283, %v1064
          %v1285 = vadd.f32 %v1284, %v1065
          %v1286 = vadd.f32 %v1285, %v1066
          %v1287 = vadd.f32 %v1286, %v1067
          %v1288 = vadd.f32 %v1287, %v1068
          %v1289 = vadd.f32 %v1288, %v1069
          %v1290 = vadd.f32 %v1289, %v1070
          %v1291 = vadd.f32 %v1290, %v1071
          %v1292 = vadd.f32 %v1291, %v1072
          %v1293 = vadd.f32 %v1292, %v1073
          %v1294 = vadd.f32 %v1293, %v1074
          %v1295 = vadd.f32 %v1294, %v1075
          %v1296 = vadd.f32 %v1295, %v1076
          %v1297 = vadd.f32 %v1296, %v1077
          %v1298 = vadd.f32 %v1297, %v1078
          %v1299 = vadd.f32 %v1298, %v1079
          %v1300 = vadd.f32 %v1299, %v1080
          %v1301 = vadd.f32 %v1300, %v1081
          %v1302 = vadd.f32 %v1301, %v1082
          %v1303 = vadd.f32 %v1302, %v1083
          %v1304 = vadd.f32 %v1303, %v1084
          %v1305 = vadd.f32 %v1304, %v1085
          %v1306 = vadd.f32 %v1305, %v1086
          %v1307 = vadd.f32 %v1306, %v1087
          %v1308 = vadd.f32 %v1307, %v1088
          %v1309 = vadd.f32 %v1308, %v1089
          %v1310 = vadd.f32 %v1309, %v1090
          %v1311 = vadd.f32 %v1310, %v1091
          %v1312 = vadd.f32 %v1311, %v1092
          %v1313 = vadd.f32 %v1312, %v1093
          %v1314 = vadd.f32 %v1313, %v1094
          %v1315 = vadd.f32 %v1314, %v1095
          %v1316 = vadd.f32 %v1315, %v1096
          %v1317 = vadd.f32 %v1316, %v1097
          %v1318 = vadd.f32 %v1317, %v1098
          %v1319 = vadd.f32 %v1318, %v1099
          %v1320 = vadd.f32 %v1319, %v1100
          %v1321 = vadd.f32 %v1320, %v1101
          %v1322 = vadd.f32 %v1321, %v1102
          %v1323 = vadd.f32 %v1322, %v1103
          %v1324 = vadd.f32 %v1323, %v1104
          %v1325 = vadd.f32 %v1324, %v1105
          %v1326 = vadd.f32 %v1325, %v1106
          %v1327 = vadd.f32 %v1326, %v1107
          %v1328 = vadd.f32 %v1327, %v1108
          %v1329 = vadd.f32 %v1328, %v1109
          %v1330 = vadd.f32 %v1329, %v1110
          %v1331 = vadd.f32 %v1330, %v1111
          %v1332 = vadd.f32 %v1331, %v1112
          %v1333 = vadd.f32 %v1332, %v1113
          %v1334 = vadd.f32 %v1333, %v1114
          %v1335 = vadd.f32 %v1334, %v1115
          %v1336 = vadd.f32 %v1335, %v1116
          %v1337 = vadd.f32 %v1336, %v1117
          %v1338 = vadd.f32 %v1337, %v1118
          %v1339 = vadd.f32 %v1338, %v1119
          %v1340 = vadd.f32 %v1128, %v1339
          %1341 = vst [vmem:[#allocation7] sm:$0xff] %v1340
        $region44: #{tpu_custom_call.1} parent=27 // pred_fallthru
          _
        %p1342 = scmp.gt.s32.totalorder %s1123, 5120
        // Predicated region
        $region45: #{tpu_custom_call.1} parent=27 // pred_check
          %p1343 = pneg %p1342
        $region46: #{tpu_custom_call.1} parent=27 // pred_check_branch
          %1345 = sbr.rel (%p1343) target = $region48
        $region47: #{tpu_custom_call.1} parent=27 // pred_region
          %s1346 = smul.u32 %s1121, 1696
          %v1347 = vlaneseq
          %v1348 = vshrl.u32 %v1347, 7
          %v1349 = vadd.s32 %v1348, 8
          %v1350 = vadd.s32 %v1348, 16
          %v1351 = vadd.s32 %v1348, 24
          %v1352 = vadd.s32 %v1348, 32
          %v1353 = vadd.s32 %v1348, 40
          %v1354 = vadd.s32 %v1348, 48
          %v1355 = vadd.s32 %v1348, 56
          %v1356 = vadd.s32 %v1348, 64
          %v1357 = vadd.s32 %v1348, 72
          %v1358 = vadd.s32 %v1348, 80
          %v1359 = vadd.s32 %v1348, 88
          %v1360 = vadd.s32 %v1348, 96
          %v1361 = vadd.s32 %v1348, 104
          %v1362 = vadd.s32 %v1348, 112
          %v1363 = vadd.s32 %v1348, 120
          %v1364 = vadd.s32 %v1348, 128
          %v1365 = vadd.s32 %v1348, 136
          %v1366 = vadd.s32 %v1348, 144
          %v1367 = vadd.s32 %v1348, 152
          %v1368 = vadd.s32 %v1348, 160
          %v1369 = vadd.s32 %v1348, 168
          %v1370 = vadd.s32 %v1348, 176
          %v1371 = vadd.s32 %v1348, 184
          %v1372 = vadd.s32 %v1348, 192
          %v1373 = vadd.s32 %v1348, 200
          %v1374 = vadd.s32 %v1348, 208
          %v1375 = vadd.s32 %v1348, 216
          %v1376 = vadd.s32 %v1348, 224
          %v1377 = vadd.s32 %v1348, 232
          %v1378 = vadd.s32 %v1348, 240
          %v1379 = vadd.s32 %v1348, 248
          %v1380 = vadd.s32 %v1348, 256
          %v1381 = vadd.s32 %v1348, 264
          %v1382 = vadd.s32 %v1348, 272
          %v1383 = vadd.s32 %v1348, 280
          %v1384 = vadd.s32 %v1348, 288
          %v1385 = vadd.s32 %v1348, 296
          %v1386 = vadd.s32 %v1348, 304
          %v1387 = vadd.s32 %v1348, 312
          %v1388 = vadd.s32 %v1348, 320
          %v1389 = vadd.s32 %v1348, 328
          %v1390 = vadd.s32 %v1348, 336
          %v1391 = vadd.s32 %v1348, 344
          %v1392 = vadd.s32 %v1348, 352
          %v1393 = vadd.s32 %v1348, 360
          %v1394 = vadd.s32 %v1348, 368
          %v1395 = vadd.s32 %v1348, 376
          %v1396 = vadd.s32 %v1348, 384
          %v1397 = vadd.s32 %v1348, 392
          %v1398 = vadd.s32 %v1348, 400
          %v1399 = vadd.s32 %v1348, 408
          %v1400 = vadd.s32 %v1348, 416
          %v1401 = vadd.s32 %v1348, 424
          %v1402 = vadd.s32 %v1348, 432
          %v1403 = vadd.s32 %v1348, 440
          %v1404 = vadd.s32 %v1348, 448
          %v1405 = vadd.s32 %v1348, 456
          %v1406 = vadd.s32 %v1348, 464
          %v1407 = vadd.s32 %v1348, 472
          %v1408 = vadd.s32 %v1348, 480
          %v1409 = vadd.s32 %v1348, 488
          %v1410 = vadd.s32 %v1348, 496
          %v1411 = vadd.s32 %v1348, 504
          %v1412 = vadd.s32 %v1348, 512
          %v1413 = vadd.s32 %v1348, 520
          %v1414 = vadd.s32 %v1348, 528
          %v1415 = vadd.s32 %v1348, 536
          %v1416 = vadd.s32 %v1348, 544
          %v1417 = vadd.s32 %v1348, 552
          %v1418 = vadd.s32 %v1348, 560
          %v1419 = vadd.s32 %v1348, 568
          %v1420 = vadd.s32 %v1348, 576
          %v1421 = vadd.s32 %v1348, 584
          %v1422 = vadd.s32 %v1348, 592
          %v1423 = vadd.s32 %v1348, 600
          %v1424 = vadd.s32 %v1348, 608
          %v1425 = vadd.s32 %v1348, 616
          %v1426 = vadd.s32 %v1348, 624
          %v1427 = vadd.s32 %v1348, 632
          %v1428 = vadd.s32 %v1348, 640
          %v1429 = vadd.s32 %v1348, 648
          %v1430 = vadd.s32 %v1348, 656
          %v1431 = vadd.s32 %v1348, 664
          %v1432 = vadd.s32 %v1348, 672
          %v1433 = vadd.s32 %v1348, 680
          %v1434 = vadd.s32 %v1348, 688
          %v1435 = vadd.s32 %v1348, 696
          %v1436 = vadd.s32 %v1348, 704
          %v1437 = vadd.s32 %v1348, 712
          %v1438 = vadd.s32 %v1348, 720
          %v1439 = vadd.s32 %v1348, 728
          %v1440 = vadd.s32 %v1348, 736
          %v1441 = vadd.s32 %v1348, 744
          %v1442 = vadd.s32 %v1348, 752
          %v1443 = vadd.s32 %v1348, 760
          %v1444 = vadd.s32 %v1348, 768
          %v1445 = vadd.s32 %v1348, 776
          %v1446 = vadd.s32 %v1348, 784
          %v1447 = vadd.s32 %v1348, 792
          %v1448 = vadd.s32 %v1348, 800
          %v1449 = vadd.s32 %v1348, 808
          %v1450 = vadd.s32 %v1348, 816
          %v1451 = vadd.s32 %v1348, 824
          %v1452 = vadd.s32 %v1348, 832
          %v1453 = vadd.s32 %v1348, 840
          %v1454 = vadd.s32 %v1348, 848
          %v1455 = vadd.s32 %v1348, 856
          %v1456 = vadd.s32 %v1348, 864
          %v1457 = vadd.s32 %v1348, 872
          %v1458 = vadd.s32 %v1348, 880
          %v1459 = vadd.s32 %v1348, 888
          %v1460 = vadd.s32 %v1348, 896
          %v1461 = vadd.s32 %v1348, 904
          %v1462 = vadd.s32 %v1348, 912
          %v1463 = vadd.s32 %v1348, 920
          %v1464 = vadd.s32 %v1348, 928
          %v1465 = vadd.s32 %v1348, 936
          %v1466 = vadd.s32 %v1348, 944
          %v1467 = vadd.s32 %v1348, 952
          %v1468 = vadd.s32 %v1348, 960
          %v1469 = vadd.s32 %v1348, 968
          %v1470 = vadd.s32 %v1348, 976
          %v1471 = vadd.s32 %v1348, 984
          %v1472 = vadd.s32 %v1348, 992
          %v1473 = vadd.s32 %v1348, 1000
          %v1474 = vadd.s32 %v1348, 1008
          %v1475 = vadd.s32 %v1348, 1016
          %v1476 = vadd.s32 %v1348, 1024
          %v1477 = vadd.s32 %v1348, 1032
          %v1478 = vadd.s32 %v1348, 1040
          %v1479 = vadd.s32 %v1348, 1048
          %v1480 = vadd.s32 %v1348, 1056
          %v1481 = vadd.s32 %v1348, 1064
          %v1482 = vadd.s32 %v1348, 1072
          %v1483 = vadd.s32 %v1348, 1080
          %v1484 = vadd.s32 %v1348, 1088
          %v1485 = vadd.s32 %v1348, 1096
          %v1486 = vadd.s32 %v1348, 1104
          %v1487 = vadd.s32 %v1348, 1112
          %v1488 = vadd.s32 %v1348, 1120
          %v1489 = vadd.s32 %v1348, 1128
          %v1490 = vadd.s32 %v1348, 1136
          %v1491 = vadd.s32 %v1348, 1144
          %v1492 = vadd.s32 %v1348, 1152
          %v1493 = vadd.s32 %v1348, 1160
          %v1494 = vadd.s32 %v1348, 1168
          %v1495 = vadd.s32 %v1348, 1176
          %v1496 = vadd.s32 %v1348, 1184
          %v1497 = vadd.s32 %v1348, 1192
          %v1498 = vadd.s32 %v1348, 1200
          %v1499 = vadd.s32 %v1348, 1208
          %v1500 = vadd.s32 %v1348, 1216
          %v1501 = vadd.s32 %v1348, 1224
          %v1502 = vadd.s32 %v1348, 1232
          %v1503 = vadd.s32 %v1348, 1240
          %v1504 = vadd.s32 %v1348, 1248
          %v1505 = vadd.s32 %v1348, 1256
          %v1506 = vadd.s32 %v1348, 1264
          %v1507 = vadd.s32 %v1348, 1272
          %v1508 = vadd.s32 %v1348, 1280
          %v1509 = vadd.s32 %v1348, 1288
          %v1510 = vadd.s32 %v1348, 1296
          %v1511 = vadd.s32 %v1348, 1304
          %v1512 = vadd.s32 %v1348, 1312
          %v1513 = vadd.s32 %v1348, 1320
          %v1514 = vadd.s32 %v1348, 1328
          %v1515 = vadd.s32 %v1348, 1336
          %v1516 = vadd.s32 %v1348, 1344
          %v1517 = vadd.s32 %v1348, 1352
          %v1518 = vadd.s32 %v1348, 1360
          %v1519 = vadd.s32 %v1348, 1368
          %v1520 = vadd.s32 %v1348, 1376
          %v1521 = vadd.s32 %v1348, 1384
          %v1522 = vadd.s32 %v1348, 1392
          %v1523 = vadd.s32 %v1348, 1400
          %v1524 = vadd.s32 %v1348, 1408
          %v1525 = vadd.s32 %v1348, 1416
          %v1526 = vadd.s32 %v1348, 1424
          %v1527 = vadd.s32 %v1348, 1432
          %v1528 = vadd.s32 %v1348, 1440
          %v1529 = vadd.s32 %v1348, 1448
          %v1530 = vadd.s32 %v1348, 1456
          %v1531 = vadd.s32 %v1348, 1464
          %v1532 = vadd.s32 %v1348, 1472
          %v1533 = vadd.s32 %v1348, 1480
          %v1534 = vadd.s32 %v1348, 1488
          %v1535 = vadd.s32 %v1348, 1496
          %v1536 = vadd.s32 %v1348, 1504
          %v1537 = vadd.s32 %v1348, 1512
          %v1538 = vadd.s32 %v1348, 1520
          %v1539 = vadd.s32 %v1348, 1528
          %v1540 = vadd.s32 %v1348, 1536
          %v1541 = vadd.s32 %v1348, 1544
          %v1542 = vadd.s32 %v1348, 1552
          %v1543 = vadd.s32 %v1348, 1560
          %v1544 = vadd.s32 %v1348, 1568
          %v1545 = vadd.s32 %v1348, 1576
          %v1546 = vadd.s32 %v1348, 1584
          %v1547 = vadd.s32 %v1348, 1592
          %v1548 = vadd.s32 %v1348, 1600
          %v1549 = vadd.s32 %v1348, 1608
          %v1550 = vadd.s32 %v1348, 1616
          %v1551 = vadd.s32 %v1348, 1624
          %v1552 = vadd.s32 %v1348, 1632
          %v1553 = vadd.s32 %v1348, 1640
          %v1554 = vadd.s32 %v1348, 1648
          %v1555 = vadd.s32 %v1348, 1656
          %v1556 = vadd.s32 %v1348, 1664
          %v1557 = vadd.s32 %v1348, 1672
          %v1558 = vadd.s32 %v1348, 1680
          %v1559 = vadd.s32 %v1348, 1688
          %v1560 = vstv %s1346
          %v1561 = vadd.s32 %v1560, %v1348
          %v1562 = vadd.s32 %v1560, %v1349
          %v1563 = vadd.s32 %v1560, %v1350
          %v1564 = vadd.s32 %v1560, %v1351
          %v1565 = vadd.s32 %v1560, %v1352
          %v1566 = vadd.s32 %v1560, %v1353
          %v1567 = vadd.s32 %v1560, %v1354
          %v1568 = vadd.s32 %v1560, %v1355
          %v1569 = vadd.s32 %v1560, %v1356
          %v1570 = vadd.s32 %v1560, %v1357
          %v1571 = vadd.s32 %v1560, %v1358
          %v1572 = vadd.s32 %v1560, %v1359
          %v1573 = vadd.s32 %v1560, %v1360
          %v1574 = vadd.s32 %v1560, %v1361
          %v1575 = vadd.s32 %v1560, %v1362
          %v1576 = vadd.s32 %v1560, %v1363
          %v1577 = vadd.s32 %v1560, %v1364
          %v1578 = vadd.s32 %v1560, %v1365
          %v1579 = vadd.s32 %v1560, %v1366
          %v1580 = vadd.s32 %v1560, %v1367
          %v1581 = vadd.s32 %v1560, %v1368
          %v1582 = vadd.s32 %v1560, %v1369
          %v1583 = vadd.s32 %v1560, %v1370
          %v1584 = vadd.s32 %v1560, %v1371
          %v1585 = vadd.s32 %v1560, %v1372
          %v1586 = vadd.s32 %v1560, %v1373
          %v1587 = vadd.s32 %v1560, %v1374
          %v1588 = vadd.s32 %v1560, %v1375
          %v1589 = vadd.s32 %v1560, %v1376
          %v1590 = vadd.s32 %v1560, %v1377
          %v1591 = vadd.s32 %v1560, %v1378
          %v1592 = vadd.s32 %v1560, %v1379
          %v1593 = vadd.s32 %v1560, %v1380
          %v1594 = vadd.s32 %v1560, %v1381
          %v1595 = vadd.s32 %v1560, %v1382
          %v1596 = vadd.s32 %v1560, %v1383
          %v1597 = vadd.s32 %v1560, %v1384
          %v1598 = vadd.s32 %v1560, %v1385
          %v1599 = vadd.s32 %v1560, %v1386
          %v1600 = vadd.s32 %v1560, %v1387
          %v1601 = vadd.s32 %v1560, %v1388
          %v1602 = vadd.s32 %v1560, %v1389
          %v1603 = vadd.s32 %v1560, %v1390
          %v1604 = vadd.s32 %v1560, %v1391
          %v1605 = vadd.s32 %v1560, %v1392
          %v1606 = vadd.s32 %v1560, %v1393
          %v1607 = vadd.s32 %v1560, %v1394
          %v1608 = vadd.s32 %v1560, %v1395
          %v1609 = vadd.s32 %v1560, %v1396
          %v1610 = vadd.s32 %v1560, %v1397
          %v1611 = vadd.s32 %v1560, %v1398
          %v1612 = vadd.s32 %v1560, %v1399
          %v1613 = vadd.s32 %v1560, %v1400
          %v1614 = vadd.s32 %v1560, %v1401
          %v1615 = vadd.s32 %v1560, %v1402
          %v1616 = vadd.s32 %v1560, %v1403
          %v1617 = vadd.s32 %v1560, %v1404
          %v1618 = vadd.s32 %v1560, %v1405
          %v1619 = vadd.s32 %v1560, %v1406
          %v1620 = vadd.s32 %v1560, %v1407
          %v1621 = vadd.s32 %v1560, %v1408
          %v1622 = vadd.s32 %v1560, %v1409
          %v1623 = vadd.s32 %v1560, %v1410
          %v1624 = vadd.s32 %v1560, %v1411
          %v1625 = vadd.s32 %v1560, %v1412
          %v1626 = vadd.s32 %v1560, %v1413
          %v1627 = vadd.s32 %v1560, %v1414
          %v1628 = vadd.s32 %v1560, %v1415
          %v1629 = vadd.s32 %v1560, %v1416
          %v1630 = vadd.s32 %v1560, %v1417
          %v1631 = vadd.s32 %v1560, %v1418
          %v1632 = vadd.s32 %v1560, %v1419
          %v1633 = vadd.s32 %v1560, %v1420
          %v1634 = vadd.s32 %v1560, %v1421
          %v1635 = vadd.s32 %v1560, %v1422
          %v1636 = vadd.s32 %v1560, %v1423
          %v1637 = vadd.s32 %v1560, %v1424
          %v1638 = vadd.s32 %v1560, %v1425
          %v1639 = vadd.s32 %v1560, %v1426
          %v1640 = vadd.s32 %v1560, %v1427
          %v1641 = vadd.s32 %v1560, %v1428
          %v1642 = vadd.s32 %v1560, %v1429
          %v1643 = vadd.s32 %v1560, %v1430
          %v1644 = vadd.s32 %v1560, %v1431
          %v1645 = vadd.s32 %v1560, %v1432
          %v1646 = vadd.s32 %v1560, %v1433
          %v1647 = vadd.s32 %v1560, %v1434
          %v1648 = vadd.s32 %v1560, %v1435
          %v1649 = vadd.s32 %v1560, %v1436
          %v1650 = vadd.s32 %v1560, %v1437
          %v1651 = vadd.s32 %v1560, %v1438
          %v1652 = vadd.s32 %v1560, %v1439
          %v1653 = vadd.s32 %v1560, %v1440
          %v1654 = vadd.s32 %v1560, %v1441
          %v1655 = vadd.s32 %v1560, %v1442
          %v1656 = vadd.s32 %v1560, %v1443
          %v1657 = vadd.s32 %v1560, %v1444
          %v1658 = vadd.s32 %v1560, %v1445
          %v1659 = vadd.s32 %v1560, %v1446
          %v1660 = vadd.s32 %v1560, %v1447
          %v1661 = vadd.s32 %v1560, %v1448
          %v1662 = vadd.s32 %v1560, %v1449
          %v1663 = vadd.s32 %v1560, %v1450
          %v1664 = vadd.s32 %v1560, %v1451
          %v1665 = vadd.s32 %v1560, %v1452
          %v1666 = vadd.s32 %v1560, %v1453
          %v1667 = vadd.s32 %v1560, %v1454
          %v1668 = vadd.s32 %v1560, %v1455
          %v1669 = vadd.s32 %v1560, %v1456
          %v1670 = vadd.s32 %v1560, %v1457
          %v1671 = vadd.s32 %v1560, %v1458
          %v1672 = vadd.s32 %v1560, %v1459
          %v1673 = vadd.s32 %v1560, %v1460
          %v1674 = vadd.s32 %v1560, %v1461
          %v1675 = vadd.s32 %v1560, %v1462
          %v1676 = vadd.s32 %v1560, %v1463
          %v1677 = vadd.s32 %v1560, %v1464
          %v1678 = vadd.s32 %v1560, %v1465
          %v1679 = vadd.s32 %v1560, %v1466
          %v1680 = vadd.s32 %v1560, %v1467
          %v1681 = vadd.s32 %v1560, %v1468
          %v1682 = vadd.s32 %v1560, %v1469
          %v1683 = vadd.s32 %v1560, %v1470
          %v1684 = vadd.s32 %v1560, %v1471
          %v1685 = vadd.s32 %v1560, %v1472
          %v1686 = vadd.s32 %v1560, %v1473
          %v1687 = vadd.s32 %v1560, %v1474
          %v1688 = vadd.s32 %v1560, %v1475
          %v1689 = vadd.s32 %v1560, %v1476
          %v1690 = vadd.s32 %v1560, %v1477
          %v1691 = vadd.s32 %v1560, %v1478
          %v1692 = vadd.s32 %v1560, %v1479
          %v1693 = vadd.s32 %v1560, %v1480
          %v1694 = vadd.s32 %v1560, %v1481
          %v1695 = vadd.s32 %v1560, %v1482
          %v1696 = vadd.s32 %v1560, %v1483
          %v1697 = vadd.s32 %v1560, %v1484
          %v1698 = vadd.s32 %v1560, %v1485
          %v1699 = vadd.s32 %v1560, %v1486
          %v1700 = vadd.s32 %v1560, %v1487
          %v1701 = vadd.s32 %v1560, %v1488
          %v1702 = vadd.s32 %v1560, %v1489
          %v1703 = vadd.s32 %v1560, %v1490
          %v1704 = vadd.s32 %v1560, %v1491
          %v1705 = vadd.s32 %v1560, %v1492
          %v1706 = vadd.s32 %v1560, %v1493
          %v1707 = vadd.s32 %v1560, %v1494
          %v1708 = vadd.s32 %v1560, %v1495
          %v1709 = vadd.s32 %v1560, %v1496
          %v1710 = vadd.s32 %v1560, %v1497
          %v1711 = vadd.s32 %v1560, %v1498
          %v1712 = vadd.s32 %v1560, %v1499
          %v1713 = vadd.s32 %v1560, %v1500
          %v1714 = vadd.s32 %v1560, %v1501
          %v1715 = vadd.s32 %v1560, %v1502
          %v1716 = vadd.s32 %v1560, %v1503
          %v1717 = vadd.s32 %v1560, %v1504
          %v1718 = vadd.s32 %v1560, %v1505
          %v1719 = vadd.s32 %v1560, %v1506
          %v1720 = vadd.s32 %v1560, %v1507
          %v1721 = vadd.s32 %v1560, %v1508
          %v1722 = vadd.s32 %v1560, %v1509
          %v1723 = vadd.s32 %v1560, %v1510
          %v1724 = vadd.s32 %v1560, %v1511
          %v1725 = vadd.s32 %v1560, %v1512
          %v1726 = vadd.s32 %v1560, %v1513
          %v1727 = vadd.s32 %v1560, %v1514
          %v1728 = vadd.s32 %v1560, %v1515
          %v1729 = vadd.s32 %v1560, %v1516
          %v1730 = vadd.s32 %v1560, %v1517
          %v1731 = vadd.s32 %v1560, %v1518
          %v1732 = vadd.s32 %v1560, %v1519
          %v1733 = vadd.s32 %v1560, %v1520
          %v1734 = vadd.s32 %v1560, %v1521
          %v1735 = vadd.s32 %v1560, %v1522
          %v1736 = vadd.s32 %v1560, %v1523
          %v1737 = vadd.s32 %v1560, %v1524
          %v1738 = vadd.s32 %v1560, %v1525
          %v1739 = vadd.s32 %v1560, %v1526
          %v1740 = vadd.s32 %v1560, %v1527
          %v1741 = vadd.s32 %v1560, %v1528
          %v1742 = vadd.s32 %v1560, %v1529
          %v1743 = vadd.s32 %v1560, %v1530
          %v1744 = vadd.s32 %v1560, %v1531
          %v1745 = vadd.s32 %v1560, %v1532
          %v1746 = vadd.s32 %v1560, %v1533
          %v1747 = vadd.s32 %v1560, %v1534
          %v1748 = vadd.s32 %v1560, %v1535
          %v1749 = vadd.s32 %v1560, %v1536
          %v1750 = vadd.s32 %v1560, %v1537
          %v1751 = vadd.s32 %v1560, %v1538
          %v1752 = vadd.s32 %v1560, %v1539
          %v1753 = vadd.s32 %v1560, %v1540
          %v1754 = vadd.s32 %v1560, %v1541
          %v1755 = vadd.s32 %v1560, %v1542
          %v1756 = vadd.s32 %v1560, %v1543
          %v1757 = vadd.s32 %v1560, %v1544
          %v1758 = vadd.s32 %v1560, %v1545
          %v1759 = vadd.s32 %v1560, %v1546
          %v1760 = vadd.s32 %v1560, %v1547
          %v1761 = vadd.s32 %v1560, %v1548
          %v1762 = vadd.s32 %v1560, %v1549
          %v1763 = vadd.s32 %v1560, %v1550
          %v1764 = vadd.s32 %v1560, %v1551
          %v1765 = vadd.s32 %v1560, %v1552
          %v1766 = vadd.s32 %v1560, %v1553
          %v1767 = vadd.s32 %v1560, %v1554
          %v1768 = vadd.s32 %v1560, %v1555
          %v1769 = vadd.s32 %v1560, %v1556
          %v1770 = vadd.s32 %v1560, %v1557
          %v1771 = vadd.s32 %v1560, %v1558
          %v1772 = vadd.s32 %v1560, %v1559
          %vm1773 = vcmp.lt.s32.totalorder %v1561, 5120
          %vm1774 = vcmp.lt.s32.totalorder %v1562, 5120
          %vm1775 = vcmp.lt.s32.totalorder %v1563, 5120
          %vm1776 = vcmp.lt.s32.totalorder %v1564, 5120
          %vm1777 = vcmp.lt.s32.totalorder %v1565, 5120
          %vm1778 = vcmp.lt.s32.totalorder %v1566, 5120
          %vm1779 = vcmp.lt.s32.totalorder %v1567, 5120
          %vm1780 = vcmp.lt.s32.totalorder %v1568, 5120
          %vm1781 = vcmp.lt.s32.totalorder %v1569, 5120
          %vm1782 = vcmp.lt.s32.totalorder %v1570, 5120
          %vm1783 = vcmp.lt.s32.totalorder %v1571, 5120
          %vm1784 = vcmp.lt.s32.totalorder %v1572, 5120
          %vm1785 = vcmp.lt.s32.totalorder %v1573, 5120
          %vm1786 = vcmp.lt.s32.totalorder %v1574, 5120
          %vm1787 = vcmp.lt.s32.totalorder %v1575, 5120
          %vm1788 = vcmp.lt.s32.totalorder %v1576, 5120
          %vm1789 = vcmp.lt.s32.totalorder %v1577, 5120
          %vm1790 = vcmp.lt.s32.totalorder %v1578, 5120
          %vm1791 = vcmp.lt.s32.totalorder %v1579, 5120
          %vm1792 = vcmp.lt.s32.totalorder %v1580, 5120
          %vm1793 = vcmp.lt.s32.totalorder %v1581, 5120
          %vm1794 = vcmp.lt.s32.totalorder %v1582, 5120
          %vm1795 = vcmp.lt.s32.totalorder %v1583, 5120
          %vm1796 = vcmp.lt.s32.totalorder %v1584, 5120
          %vm1797 = vcmp.lt.s32.totalorder %v1585, 5120
          %vm1798 = vcmp.lt.s32.totalorder %v1586, 5120
          %vm1799 = vcmp.lt.s32.totalorder %v1587, 5120
          %vm1800 = vcmp.lt.s32.totalorder %v1588, 5120
          %vm1801 = vcmp.lt.s32.totalorder %v1589, 5120
          %vm1802 = vcmp.lt.s32.totalorder %v1590, 5120
          %vm1803 = vcmp.lt.s32.totalorder %v1591, 5120
          %vm1804 = vcmp.lt.s32.totalorder %v1592, 5120
          %vm1805 = vcmp.lt.s32.totalorder %v1593, 5120
          %vm1806 = vcmp.lt.s32.totalorder %v1594, 5120
          %vm1807 = vcmp.lt.s32.totalorder %v1595, 5120
          %vm1808 = vcmp.lt.s32.totalorder %v1596, 5120
          %vm1809 = vcmp.lt.s32.totalorder %v1597, 5120
          %vm1810 = vcmp.lt.s32.totalorder %v1598, 5120
          %vm1811 = vcmp.lt.s32.totalorder %v1599, 5120
          %vm1812 = vcmp.lt.s32.totalorder %v1600, 5120
          %vm1813 = vcmp.lt.s32.totalorder %v1601, 5120
          %vm1814 = vcmp.lt.s32.totalorder %v1602, 5120
          %vm1815 = vcmp.lt.s32.totalorder %v1603, 5120
          %vm1816 = vcmp.lt.s32.totalorder %v1604, 5120
          %vm1817 = vcmp.lt.s32.totalorder %v1605, 5120
          %vm1818 = vcmp.lt.s32.totalorder %v1606, 5120
          %vm1819 = vcmp.lt.s32.totalorder %v1607, 5120
          %vm1820 = vcmp.lt.s32.totalorder %v1608, 5120
          %vm1821 = vcmp.lt.s32.totalorder %v1609, 5120
          %vm1822 = vcmp.lt.s32.totalorder %v1610, 5120
          %vm1823 = vcmp.lt.s32.totalorder %v1611, 5120
          %vm1824 = vcmp.lt.s32.totalorder %v1612, 5120
          %vm1825 = vcmp.lt.s32.totalorder %v1613, 5120
          %vm1826 = vcmp.lt.s32.totalorder %v1614, 5120
          %vm1827 = vcmp.lt.s32.totalorder %v1615, 5120
          %vm1828 = vcmp.lt.s32.totalorder %v1616, 5120
          %vm1829 = vcmp.lt.s32.totalorder %v1617, 5120
          %vm1830 = vcmp.lt.s32.totalorder %v1618, 5120
          %vm1831 = vcmp.lt.s32.totalorder %v1619, 5120
          %vm1832 = vcmp.lt.s32.totalorder %v1620, 5120
          %vm1833 = vcmp.lt.s32.totalorder %v1621, 5120
          %vm1834 = vcmp.lt.s32.totalorder %v1622, 5120
          %vm1835 = vcmp.lt.s32.totalorder %v1623, 5120
          %vm1836 = vcmp.lt.s32.totalorder %v1624, 5120
          %vm1837 = vcmp.lt.s32.totalorder %v1625, 5120
          %vm1838 = vcmp.lt.s32.totalorder %v1626, 5120
          %vm1839 = vcmp.lt.s32.totalorder %v1627, 5120
          %vm1840 = vcmp.lt.s32.totalorder %v1628, 5120
          %vm1841 = vcmp.lt.s32.totalorder %v1629, 5120
          %vm1842 = vcmp.lt.s32.totalorder %v1630, 5120
          %vm1843 = vcmp.lt.s32.totalorder %v1631, 5120
          %vm1844 = vcmp.lt.s32.totalorder %v1632, 5120
          %vm1845 = vcmp.lt.s32.totalorder %v1633, 5120
          %vm1846 = vcmp.lt.s32.totalorder %v1634, 5120
          %vm1847 = vcmp.lt.s32.totalorder %v1635, 5120
          %vm1848 = vcmp.lt.s32.totalorder %v1636, 5120
          %vm1849 = vcmp.lt.s32.totalorder %v1637, 5120
          %vm1850 = vcmp.lt.s32.totalorder %v1638, 5120
          %vm1851 = vcmp.lt.s32.totalorder %v1639, 5120
          %vm1852 = vcmp.lt.s32.totalorder %v1640, 5120
          %vm1853 = vcmp.lt.s32.totalorder %v1641, 5120
          %vm1854 = vcmp.lt.s32.totalorder %v1642, 5120
          %vm1855 = vcmp.lt.s32.totalorder %v1643, 5120
          %vm1856 = vcmp.lt.s32.totalorder %v1644, 5120
          %vm1857 = vcmp.lt.s32.totalorder %v1645, 5120
          %vm1858 = vcmp.lt.s32.totalorder %v1646, 5120
          %vm1859 = vcmp.lt.s32.totalorder %v1647, 5120
          %vm1860 = vcmp.lt.s32.totalorder %v1648, 5120
          %vm1861 = vcmp.lt.s32.totalorder %v1649, 5120
          %vm1862 = vcmp.lt.s32.totalorder %v1650, 5120
          %vm1863 = vcmp.lt.s32.totalorder %v1651, 5120
          %vm1864 = vcmp.lt.s32.totalorder %v1652, 5120
          %vm1865 = vcmp.lt.s32.totalorder %v1653, 5120
          %vm1866 = vcmp.lt.s32.totalorder %v1654, 5120
          %vm1867 = vcmp.lt.s32.totalorder %v1655, 5120
          %vm1868 = vcmp.lt.s32.totalorder %v1656, 5120
          %vm1869 = vcmp.lt.s32.totalorder %v1657, 5120
          %vm1870 = vcmp.lt.s32.totalorder %v1658, 5120
          %vm1871 = vcmp.lt.s32.totalorder %v1659, 5120
          %vm1872 = vcmp.lt.s32.totalorder %v1660, 5120
          %vm1873 = vcmp.lt.s32.totalorder %v1661, 5120
          %vm1874 = vcmp.lt.s32.totalorder %v1662, 5120
          %vm1875 = vcmp.lt.s32.totalorder %v1663, 5120
          %vm1876 = vcmp.lt.s32.totalorder %v1664, 5120
          %vm1877 = vcmp.lt.s32.totalorder %v1665, 5120
          %vm1878 = vcmp.lt.s32.totalorder %v1666, 5120
          %vm1879 = vcmp.lt.s32.totalorder %v1667, 5120
          %vm1880 = vcmp.lt.s32.totalorder %v1668, 5120
          %vm1881 = vcmp.lt.s32.totalorder %v1669, 5120
          %vm1882 = vcmp.lt.s32.totalorder %v1670, 5120
          %vm1883 = vcmp.lt.s32.totalorder %v1671, 5120
          %vm1884 = vcmp.lt.s32.totalorder %v1672, 5120
          %vm1885 = vcmp.lt.s32.totalorder %v1673, 5120
          %vm1886 = vcmp.lt.s32.totalorder %v1674, 5120
          %vm1887 = vcmp.lt.s32.totalorder %v1675, 5120
          %vm1888 = vcmp.lt.s32.totalorder %v1676, 5120
          %vm1889 = vcmp.lt.s32.totalorder %v1677, 5120
          %vm1890 = vcmp.lt.s32.totalorder %v1678, 5120
          %vm1891 = vcmp.lt.s32.totalorder %v1679, 5120
          %vm1892 = vcmp.lt.s32.totalorder %v1680, 5120
          %vm1893 = vcmp.lt.s32.totalorder %v1681, 5120
          %vm1894 = vcmp.lt.s32.totalorder %v1682, 5120
          %vm1895 = vcmp.lt.s32.totalorder %v1683, 5120
          %vm1896 = vcmp.lt.s32.totalorder %v1684, 5120
          %vm1897 = vcmp.lt.s32.totalorder %v1685, 5120
          %vm1898 = vcmp.lt.s32.totalorder %v1686, 5120
          %vm1899 = vcmp.lt.s32.totalorder %v1687, 5120
          %vm1900 = vcmp.lt.s32.totalorder %v1688, 5120
          %vm1901 = vcmp.lt.s32.totalorder %v1689, 5120
          %vm1902 = vcmp.lt.s32.totalorder %v1690, 5120
          %vm1903 = vcmp.lt.s32.totalorder %v1691, 5120
          %vm1904 = vcmp.lt.s32.totalorder %v1692, 5120
          %vm1905 = vcmp.lt.s32.totalorder %v1693, 5120
          %vm1906 = vcmp.lt.s32.totalorder %v1694, 5120
          %vm1907 = vcmp.lt.s32.totalorder %v1695, 5120
          %vm1908 = vcmp.lt.s32.totalorder %v1696, 5120
          %vm1909 = vcmp.lt.s32.totalorder %v1697, 5120
          %vm1910 = vcmp.lt.s32.totalorder %v1698, 5120
          %vm1911 = vcmp.lt.s32.totalorder %v1699, 5120
          %vm1912 = vcmp.lt.s32.totalorder %v1700, 5120
          %vm1913 = vcmp.lt.s32.totalorder %v1701, 5120
          %vm1914 = vcmp.lt.s32.totalorder %v1702, 5120
          %vm1915 = vcmp.lt.s32.totalorder %v1703, 5120
          %vm1916 = vcmp.lt.s32.totalorder %v1704, 5120
          %vm1917 = vcmp.lt.s32.totalorder %v1705, 5120
          %vm1918 = vcmp.lt.s32.totalorder %v1706, 5120
          %vm1919 = vcmp.lt.s32.totalorder %v1707, 5120
          %vm1920 = vcmp.lt.s32.totalorder %v1708, 5120
          %vm1921 = vcmp.lt.s32.totalorder %v1709, 5120
          %vm1922 = vcmp.lt.s32.totalorder %v1710, 5120
          %vm1923 = vcmp.lt.s32.totalorder %v1711, 5120
          %vm1924 = vcmp.lt.s32.totalorder %v1712, 5120
          %vm1925 = vcmp.lt.s32.totalorder %v1713, 5120
          %vm1926 = vcmp.lt.s32.totalorder %v1714, 5120
          %vm1927 = vcmp.lt.s32.totalorder %v1715, 5120
          %vm1928 = vcmp.lt.s32.totalorder %v1716, 5120
          %vm1929 = vcmp.lt.s32.totalorder %v1717, 5120
          %vm1930 = vcmp.lt.s32.totalorder %v1718, 5120
          %vm1931 = vcmp.lt.s32.totalorder %v1719, 5120
          %vm1932 = vcmp.lt.s32.totalorder %v1720, 5120
          %vm1933 = vcmp.lt.s32.totalorder %v1721, 5120
          %vm1934 = vcmp.lt.s32.totalorder %v1722, 5120
          %vm1935 = vcmp.lt.s32.totalorder %v1723, 5120
          %vm1936 = vcmp.lt.s32.totalorder %v1724, 5120
          %vm1937 = vcmp.lt.s32.totalorder %v1725, 5120
          %vm1938 = vcmp.lt.s32.totalorder %v1726, 5120
          %vm1939 = vcmp.lt.s32.totalorder %v1727, 5120
          %vm1940 = vcmp.lt.s32.totalorder %v1728, 5120
          %vm1941 = vcmp.lt.s32.totalorder %v1729, 5120
          %vm1942 = vcmp.lt.s32.totalorder %v1730, 5120
          %vm1943 = vcmp.lt.s32.totalorder %v1731, 5120
          %vm1944 = vcmp.lt.s32.totalorder %v1732, 5120
          %vm1945 = vcmp.lt.s32.totalorder %v1733, 5120
          %vm1946 = vcmp.lt.s32.totalorder %v1734, 5120
          %vm1947 = vcmp.lt.s32.totalorder %v1735, 5120
          %vm1948 = vcmp.lt.s32.totalorder %v1736, 5120
          %vm1949 = vcmp.lt.s32.totalorder %v1737, 5120
          %vm1950 = vcmp.lt.s32.totalorder %v1738, 5120
          %vm1951 = vcmp.lt.s32.totalorder %v1739, 5120
          %vm1952 = vcmp.lt.s32.totalorder %v1740, 5120
          %vm1953 = vcmp.lt.s32.totalorder %v1741, 5120
          %vm1954 = vcmp.lt.s32.totalorder %v1742, 5120
          %vm1955 = vcmp.lt.s32.totalorder %v1743, 5120
          %vm1956 = vcmp.lt.s32.totalorder %v1744, 5120
          %vm1957 = vcmp.lt.s32.totalorder %v1745, 5120
          %vm1958 = vcmp.lt.s32.totalorder %v1746, 5120
          %vm1959 = vcmp.lt.s32.totalorder %v1747, 5120
          %vm1960 = vcmp.lt.s32.totalorder %v1748, 5120
          %vm1961 = vcmp.lt.s32.totalorder %v1749, 5120
          %vm1962 = vcmp.lt.s32.totalorder %v1750, 5120
          %vm1963 = vcmp.lt.s32.totalorder %v1751, 5120
          %vm1964 = vcmp.lt.s32.totalorder %v1752, 5120
          %vm1965 = vcmp.lt.s32.totalorder %v1753, 5120
          %vm1966 = vcmp.lt.s32.totalorder %v1754, 5120
          %vm1967 = vcmp.lt.s32.totalorder %v1755, 5120
          %vm1968 = vcmp.lt.s32.totalorder %v1756, 5120
          %vm1969 = vcmp.lt.s32.totalorder %v1757, 5120
          %vm1970 = vcmp.lt.s32.totalorder %v1758, 5120
          %vm1971 = vcmp.lt.s32.totalorder %v1759, 5120
          %vm1972 = vcmp.lt.s32.totalorder %v1760, 5120
          %vm1973 = vcmp.lt.s32.totalorder %v1761, 5120
          %vm1974 = vcmp.lt.s32.totalorder %v1762, 5120
          %vm1975 = vcmp.lt.s32.totalorder %v1763, 5120
          %vm1976 = vcmp.lt.s32.totalorder %v1764, 5120
          %vm1977 = vcmp.lt.s32.totalorder %v1765, 5120
          %vm1978 = vcmp.lt.s32.totalorder %v1766, 5120
          %vm1979 = vcmp.lt.s32.totalorder %v1767, 5120
          %vm1980 = vcmp.lt.s32.totalorder %v1768, 5120
          %vm1981 = vcmp.lt.s32.totalorder %v1769, 5120
          %vm1982 = vcmp.lt.s32.totalorder %v1770, 5120
          %vm1983 = vcmp.lt.s32.totalorder %v1771, 5120
          %vm1984 = vcmp.lt.s32.totalorder %v1772, 5120
          %v1985 = vsel %vm1773, 1, 0
          %v1986 = vsel %vm1774, 1, 0
          %v1987 = vsel %vm1775, 1, 0
          %v1988 = vsel %vm1776, 1, 0
          %v1989 = vsel %vm1777, 1, 0
          %v1990 = vsel %vm1778, 1, 0
          %v1991 = vsel %vm1779, 1, 0
          %v1992 = vsel %vm1780, 1, 0
          %v1993 = vsel %vm1781, 1, 0
          %v1994 = vsel %vm1782, 1, 0
          %v1995 = vsel %vm1783, 1, 0
          %v1996 = vsel %vm1784, 1, 0
          %v1997 = vsel %vm1785, 1, 0
          %v1998 = vsel %vm1786, 1, 0
          %v1999 = vsel %vm1787, 1, 0
          %v2000 = vsel %vm1788, 1, 0
          %v2001 = vsel %vm1789, 1, 0
          %v2002 = vsel %vm1790, 1, 0
          %v2003 = vsel %vm1791, 1, 0
          %v2004 = vsel %vm1792, 1, 0
          %v2005 = vsel %vm1793, 1, 0
          %v2006 = vsel %vm1794, 1, 0
          %v2007 = vsel %vm1795, 1, 0
          %v2008 = vsel %vm1796, 1, 0
          %v2009 = vsel %vm1797, 1, 0
          %v2010 = vsel %vm1798, 1, 0
          %v2011 = vsel %vm1799, 1, 0
          %v2012 = vsel %vm1800, 1, 0
          %v2013 = vsel %vm1801, 1, 0
          %v2014 = vsel %vm1802, 1, 0
          %v2015 = vsel %vm1803, 1, 0
          %v2016 = vsel %vm1804, 1, 0
          %v2017 = vsel %vm1805, 1, 0
          %v2018 = vsel %vm1806, 1, 0
          %v2019 = vsel %vm1807, 1, 0
          %v2020 = vsel %vm1808, 1, 0
          %v2021 = vsel %vm1809, 1, 0
          %v2022 = vsel %vm1810, 1, 0
          %v2023 = vsel %vm1811, 1, 0
          %v2024 = vsel %vm1812, 1, 0
          %v2025 = vsel %vm1813, 1, 0
          %v2026 = vsel %vm1814, 1, 0
          %v2027 = vsel %vm1815, 1, 0
          %v2028 = vsel %vm1816, 1, 0
          %v2029 = vsel %vm1817, 1, 0
          %v2030 = vsel %vm1818, 1, 0
          %v2031 = vsel %vm1819, 1, 0
          %v2032 = vsel %vm1820, 1, 0
          %v2033 = vsel %vm1821, 1, 0
          %v2034 = vsel %vm1822, 1, 0
          %v2035 = vsel %vm1823, 1, 0
          %v2036 = vsel %vm1824, 1, 0
          %v2037 = vsel %vm1825, 1, 0
          %v2038 = vsel %vm1826, 1, 0
          %v2039 = vsel %vm1827, 1, 0
          %v2040 = vsel %vm1828, 1, 0
          %v2041 = vsel %vm1829, 1, 0
          %v2042 = vsel %vm1830, 1, 0
          %v2043 = vsel %vm1831, 1, 0
          %v2044 = vsel %vm1832, 1, 0
          %v2045 = vsel %vm1833, 1, 0
          %v2046 = vsel %vm1834, 1, 0
          %v2047 = vsel %vm1835, 1, 0
          %v2048 = vsel %vm1836, 1, 0
          %v2049 = vsel %vm1837, 1, 0
          %v2050 = vsel %vm1838, 1, 0
          %v2051 = vsel %vm1839, 1, 0
          %v2052 = vsel %vm1840, 1, 0
          %v2053 = vsel %vm1841, 1, 0
          %v2054 = vsel %vm1842, 1, 0
          %v2055 = vsel %vm1843, 1, 0
          %v2056 = vsel %vm1844, 1, 0
          %v2057 = vsel %vm1845, 1, 0
          %v2058 = vsel %vm1846, 1, 0
          %v2059 = vsel %vm1847, 1, 0
          %v2060 = vsel %vm1848, 1, 0
          %v2061 = vsel %vm1849, 1, 0
          %v2062 = vsel %vm1850, 1, 0
          %v2063 = vsel %vm1851, 1, 0
          %v2064 = vsel %vm1852, 1, 0
          %v2065 = vsel %vm1853, 1, 0
          %v2066 = vsel %vm1854, 1, 0
          %v2067 = vsel %vm1855, 1, 0
          %v2068 = vsel %vm1856, 1, 0
          %v2069 = vsel %vm1857, 1, 0
          %v2070 = vsel %vm1858, 1, 0
          %v2071 = vsel %vm1859, 1, 0
          %v2072 = vsel %vm1860, 1, 0
          %v2073 = vsel %vm1861, 1, 0
          %v2074 = vsel %vm1862, 1, 0
          %v2075 = vsel %vm1863, 1, 0
          %v2076 = vsel %vm1864, 1, 0
          %v2077 = vsel %vm1865, 1, 0
          %v2078 = vsel %vm1866, 1, 0
          %v2079 = vsel %vm1867, 1, 0
          %v2080 = vsel %vm1868, 1, 0
          %v2081 = vsel %vm1869, 1, 0
          %v2082 = vsel %vm1870, 1, 0
          %v2083 = vsel %vm1871, 1, 0
          %v2084 = vsel %vm1872, 1, 0
          %v2085 = vsel %vm1873, 1, 0
          %v2086 = vsel %vm1874, 1, 0
          %v2087 = vsel %vm1875, 1, 0
          %v2088 = vsel %vm1876, 1, 0
          %v2089 = vsel %vm1877, 1, 0
          %v2090 = vsel %vm1878, 1, 0
          %v2091 = vsel %vm1879, 1, 0
          %v2092 = vsel %vm1880, 1, 0
          %v2093 = vsel %vm1881, 1, 0
          %v2094 = vsel %vm1882, 1, 0
          %v2095 = vsel %vm1883, 1, 0
          %v2096 = vsel %vm1884, 1, 0
          %v2097 = vsel %vm1885, 1, 0
          %v2098 = vsel %vm1886, 1, 0
          %v2099 = vsel %vm1887, 1, 0
          %v2100 = vsel %vm1888, 1, 0
          %v2101 = vsel %vm1889, 1, 0
          %v2102 = vsel %vm1890, 1, 0
          %v2103 = vsel %vm1891, 1, 0
          %v2104 = vsel %vm1892, 1, 0
          %v2105 = vsel %vm1893, 1, 0
          %v2106 = vsel %vm1894, 1, 0
          %v2107 = vsel %vm1895, 1, 0
          %v2108 = vsel %vm1896, 1, 0
          %v2109 = vsel %vm1897, 1, 0
          %v2110 = vsel %vm1898, 1, 0
          %v2111 = vsel %vm1899, 1, 0
          %v2112 = vsel %vm1900, 1, 0
          %v2113 = vsel %vm1901, 1, 0
          %v2114 = vsel %vm1902, 1, 0
          %v2115 = vsel %vm1903, 1, 0
          %v2116 = vsel %vm1904, 1, 0
          %v2117 = vsel %vm1905, 1, 0
          %v2118 = vsel %vm1906, 1, 0
          %v2119 = vsel %vm1907, 1, 0
          %v2120 = vsel %vm1908, 1, 0
          %v2121 = vsel %vm1909, 1, 0
          %v2122 = vsel %vm1910, 1, 0
          %v2123 = vsel %vm1911, 1, 0
          %v2124 = vsel %vm1912, 1, 0
          %v2125 = vsel %vm1913, 1, 0
          %v2126 = vsel %vm1914, 1, 0
          %v2127 = vsel %vm1915, 1, 0
          %v2128 = vsel %vm1916, 1, 0
          %v2129 = vsel %vm1917, 1, 0
          %v2130 = vsel %vm1918, 1, 0
          %v2131 = vsel %vm1919, 1, 0
          %v2132 = vsel %vm1920, 1, 0
          %v2133 = vsel %vm1921, 1, 0
          %v2134 = vsel %vm1922, 1, 0
          %v2135 = vsel %vm1923, 1, 0
          %v2136 = vsel %vm1924, 1, 0
          %v2137 = vsel %vm1925, 1, 0
          %v2138 = vsel %vm1926, 1, 0
          %v2139 = vsel %vm1927, 1, 0
          %v2140 = vsel %vm1928, 1, 0
          %v2141 = vsel %vm1929, 1, 0
          %v2142 = vsel %vm1930, 1, 0
          %v2143 = vsel %vm1931, 1, 0
          %v2144 = vsel %vm1932, 1, 0
          %v2145 = vsel %vm1933, 1, 0
          %v2146 = vsel %vm1934, 1, 0
          %v2147 = vsel %vm1935, 1, 0
          %v2148 = vsel %vm1936, 1, 0
          %v2149 = vsel %vm1937, 1, 0
          %v2150 = vsel %vm1938, 1, 0
          %v2151 = vsel %vm1939, 1, 0
          %v2152 = vsel %vm1940, 1, 0
          %v2153 = vsel %vm1941, 1, 0
          %v2154 = vsel %vm1942, 1, 0
          %v2155 = vsel %vm1943, 1, 0
          %v2156 = vsel %vm1944, 1, 0
          %v2157 = vsel %vm1945, 1, 0
          %v2158 = vsel %vm1946, 1, 0
          %v2159 = vsel %vm1947, 1, 0
          %v2160 = vsel %vm1948, 1, 0
          %v2161 = vsel %vm1949, 1, 0
          %v2162 = vsel %vm1950, 1, 0
          %v2163 = vsel %vm1951, 1, 0
          %v2164 = vsel %vm1952, 1, 0
          %v2165 = vsel %vm1953, 1, 0
          %v2166 = vsel %vm1954, 1, 0
          %v2167 = vsel %vm1955, 1, 0
          %v2168 = vsel %vm1956, 1, 0
          %v2169 = vsel %vm1957, 1, 0
          %v2170 = vsel %vm1958, 1, 0
          %v2171 = vsel %vm1959, 1, 0
          %v2172 = vsel %vm1960, 1, 0
          %v2173 = vsel %vm1961, 1, 0
          %v2174 = vsel %vm1962, 1, 0
          %v2175 = vsel %vm1963, 1, 0
          %v2176 = vsel %vm1964, 1, 0
          %v2177 = vsel %vm1965, 1, 0
          %v2178 = vsel %vm1966, 1, 0
          %v2179 = vsel %vm1967, 1, 0
          %v2180 = vsel %vm1968, 1, 0
          %v2181 = vsel %vm1969, 1, 0
          %v2182 = vsel %vm1970, 1, 0
          %v2183 = vsel %vm1971, 1, 0
          %v2184 = vsel %vm1972, 1, 0
          %v2185 = vsel %vm1973, 1, 0
          %v2186 = vsel %vm1974, 1, 0
          %v2187 = vsel %vm1975, 1, 0
          %v2188 = vsel %vm1976, 1, 0
          %v2189 = vsel %vm1977, 1, 0
          %v2190 = vsel %vm1978, 1, 0
          %v2191 = vsel %vm1979, 1, 0
          %v2192 = vsel %vm1980, 1, 0
          %v2193 = vsel %vm1981, 1, 0
          %v2194 = vsel %vm1982, 1, 0
          %v2195 = vsel %vm1983, 1, 0
          %v2196 = vsel %vm1984, 1, 0
          %vm2197 = vcmp.eq.s32.totalorder %v1985, 1
          %vm2198 = vcmp.eq.s32.totalorder %v1986, 1
          %vm2199 = vcmp.eq.s32.totalorder %v1987, 1
          %vm2200 = vcmp.eq.s32.totalorder %v1988, 1
          %vm2201 = vcmp.eq.s32.totalorder %v1989, 1
          %vm2202 = vcmp.eq.s32.totalorder %v1990, 1
          %vm2203 = vcmp.eq.s32.totalorder %v1991, 1
          %vm2204 = vcmp.eq.s32.totalorder %v1992, 1
          %vm2205 = vcmp.eq.s32.totalorder %v1993, 1
          %vm2206 = vcmp.eq.s32.totalorder %v1994, 1
          %vm2207 = vcmp.eq.s32.totalorder %v1995, 1
          %vm2208 = vcmp.eq.s32.totalorder %v1996, 1
          %vm2209 = vcmp.eq.s32.totalorder %v1997, 1
          %vm2210 = vcmp.eq.s32.totalorder %v1998, 1
          %vm2211 = vcmp.eq.s32.totalorder %v1999, 1
          %vm2212 = vcmp.eq.s32.totalorder %v2000, 1
          %vm2213 = vcmp.eq.s32.totalorder %v2001, 1
          %vm2214 = vcmp.eq.s32.totalorder %v2002, 1
          %vm2215 = vcmp.eq.s32.totalorder %v2003, 1
          %vm2216 = vcmp.eq.s32.totalorder %v2004, 1
          %vm2217 = vcmp.eq.s32.totalorder %v2005, 1
          %vm2218 = vcmp.eq.s32.totalorder %v2006, 1
          %vm2219 = vcmp.eq.s32.totalorder %v2007, 1
          %vm2220 = vcmp.eq.s32.totalorder %v2008, 1
          %vm2221 = vcmp.eq.s32.totalorder %v2009, 1
          %vm2222 = vcmp.eq.s32.totalorder %v2010, 1
          %vm2223 = vcmp.eq.s32.totalorder %v2011, 1
          %vm2224 = vcmp.eq.s32.totalorder %v2012, 1
          %vm2225 = vcmp.eq.s32.totalorder %v2013, 1
          %vm2226 = vcmp.eq.s32.totalorder %v2014, 1
          %vm2227 = vcmp.eq.s32.totalorder %v2015, 1
          %vm2228 = vcmp.eq.s32.totalorder %v2016, 1
          %vm2229 = vcmp.eq.s32.totalorder %v2017, 1
          %vm2230 = vcmp.eq.s32.totalorder %v2018, 1
          %vm2231 = vcmp.eq.s32.totalorder %v2019, 1
          %vm2232 = vcmp.eq.s32.totalorder %v2020, 1
          %vm2233 = vcmp.eq.s32.totalorder %v2021, 1
          %vm2234 = vcmp.eq.s32.totalorder %v2022, 1
          %vm2235 = vcmp.eq.s32.totalorder %v2023, 1
          %vm2236 = vcmp.eq.s32.totalorder %v2024, 1
          %vm2237 = vcmp.eq.s32.totalorder %v2025, 1
          %vm2238 = vcmp.eq.s32.totalorder %v2026, 1
          %vm2239 = vcmp.eq.s32.totalorder %v2027, 1
          %vm2240 = vcmp.eq.s32.totalorder %v2028, 1
          %vm2241 = vcmp.eq.s32.totalorder %v2029, 1
          %vm2242 = vcmp.eq.s32.totalorder %v2030, 1
          %vm2243 = vcmp.eq.s32.totalorder %v2031, 1
          %vm2244 = vcmp.eq.s32.totalorder %v2032, 1
          %vm2245 = vcmp.eq.s32.totalorder %v2033, 1
          %vm2246 = vcmp.eq.s32.totalorder %v2034, 1
          %vm2247 = vcmp.eq.s32.totalorder %v2035, 1
          %vm2248 = vcmp.eq.s32.totalorder %v2036, 1
          %vm2249 = vcmp.eq.s32.totalorder %v2037, 1
          %vm2250 = vcmp.eq.s32.totalorder %v2038, 1
          %vm2251 = vcmp.eq.s32.totalorder %v2039, 1
          %vm2252 = vcmp.eq.s32.totalorder %v2040, 1
          %vm2253 = vcmp.eq.s32.totalorder %v2041, 1
          %vm2254 = vcmp.eq.s32.totalorder %v2042, 1
          %vm2255 = vcmp.eq.s32.totalorder %v2043, 1
          %vm2256 = vcmp.eq.s32.totalorder %v2044, 1
          %vm2257 = vcmp.eq.s32.totalorder %v2045, 1
          %vm2258 = vcmp.eq.s32.totalorder %v2046, 1
          %vm2259 = vcmp.eq.s32.totalorder %v2047, 1
          %vm2260 = vcmp.eq.s32.totalorder %v2048, 1
          %vm2261 = vcmp.eq.s32.totalorder %v2049, 1
          %vm2262 = vcmp.eq.s32.totalorder %v2050, 1
          %vm2263 = vcmp.eq.s32.totalorder %v2051, 1
          %vm2264 = vcmp.eq.s32.totalorder %v2052, 1
          %vm2265 = vcmp.eq.s32.totalorder %v2053, 1
          %vm2266 = vcmp.eq.s32.totalorder %v2054, 1
          %vm2267 = vcmp.eq.s32.totalorder %v2055, 1
          %vm2268 = vcmp.eq.s32.totalorder %v2056, 1
          %vm2269 = vcmp.eq.s32.totalorder %v2057, 1
          %vm2270 = vcmp.eq.s32.totalorder %v2058, 1
          %vm2271 = vcmp.eq.s32.totalorder %v2059, 1
          %vm2272 = vcmp.eq.s32.totalorder %v2060, 1
          %vm2273 = vcmp.eq.s32.totalorder %v2061, 1
          %vm2274 = vcmp.eq.s32.totalorder %v2062, 1
          %vm2275 = vcmp.eq.s32.totalorder %v2063, 1
          %vm2276 = vcmp.eq.s32.totalorder %v2064, 1
          %vm2277 = vcmp.eq.s32.totalorder %v2065, 1
          %vm2278 = vcmp.eq.s32.totalorder %v2066, 1
          %vm2279 = vcmp.eq.s32.totalorder %v2067, 1
          %vm2280 = vcmp.eq.s32.totalorder %v2068, 1
          %vm2281 = vcmp.eq.s32.totalorder %v2069, 1
          %vm2282 = vcmp.eq.s32.totalorder %v2070, 1
          %vm2283 = vcmp.eq.s32.totalorder %v2071, 1
          %vm2284 = vcmp.eq.s32.totalorder %v2072, 1
          %vm2285 = vcmp.eq.s32.totalorder %v2073, 1
          %vm2286 = vcmp.eq.s32.totalorder %v2074, 1
          %vm2287 = vcmp.eq.s32.totalorder %v2075, 1
          %vm2288 = vcmp.eq.s32.totalorder %v2076, 1
          %vm2289 = vcmp.eq.s32.totalorder %v2077, 1
          %vm2290 = vcmp.eq.s32.totalorder %v2078, 1
          %vm2291 = vcmp.eq.s32.totalorder %v2079, 1
          %vm2292 = vcmp.eq.s32.totalorder %v2080, 1
          %vm2293 = vcmp.eq.s32.totalorder %v2081, 1
          %vm2294 = vcmp.eq.s32.totalorder %v2082, 1
          %vm2295 = vcmp.eq.s32.totalorder %v2083, 1
          %vm2296 = vcmp.eq.s32.totalorder %v2084, 1
          %vm2297 = vcmp.eq.s32.totalorder %v2085, 1
          %vm2298 = vcmp.eq.s32.totalorder %v2086, 1
          %vm2299 = vcmp.eq.s32.totalorder %v2087, 1
          %vm2300 = vcmp.eq.s32.totalorder %v2088, 1
          %vm2301 = vcmp.eq.s32.totalorder %v2089, 1
          %vm2302 = vcmp.eq.s32.totalorder %v2090, 1
          %vm2303 = vcmp.eq.s32.totalorder %v2091, 1
          %vm2304 = vcmp.eq.s32.totalorder %v2092, 1
          %vm2305 = vcmp.eq.s32.totalorder %v2093, 1
          %vm2306 = vcmp.eq.s32.totalorder %v2094, 1
          %vm2307 = vcmp.eq.s32.totalorder %v2095, 1
          %vm2308 = vcmp.eq.s32.totalorder %v2096, 1
          %vm2309 = vcmp.eq.s32.totalorder %v2097, 1
          %vm2310 = vcmp.eq.s32.totalorder %v2098, 1
          %vm2311 = vcmp.eq.s32.totalorder %v2099, 1
          %vm2312 = vcmp.eq.s32.totalorder %v2100, 1
          %vm2313 = vcmp.eq.s32.totalorder %v2101, 1
          %vm2314 = vcmp.eq.s32.totalorder %v2102, 1
          %vm2315 = vcmp.eq.s32.totalorder %v2103, 1
          %vm2316 = vcmp.eq.s32.totalorder %v2104, 1
          %vm2317 = vcmp.eq.s32.totalorder %v2105, 1
          %vm2318 = vcmp.eq.s32.totalorder %v2106, 1
          %vm2319 = vcmp.eq.s32.totalorder %v2107, 1
          %vm2320 = vcmp.eq.s32.totalorder %v2108, 1
          %vm2321 = vcmp.eq.s32.totalorder %v2109, 1
          %vm2322 = vcmp.eq.s32.totalorder %v2110, 1
          %vm2323 = vcmp.eq.s32.totalorder %v2111, 1
          %vm2324 = vcmp.eq.s32.totalorder %v2112, 1
          %vm2325 = vcmp.eq.s32.totalorder %v2113, 1
          %vm2326 = vcmp.eq.s32.totalorder %v2114, 1
          %vm2327 = vcmp.eq.s32.totalorder %v2115, 1
          %vm2328 = vcmp.eq.s32.totalorder %v2116, 1
          %vm2329 = vcmp.eq.s32.totalorder %v2117, 1
          %vm2330 = vcmp.eq.s32.totalorder %v2118, 1
          %vm2331 = vcmp.eq.s32.totalorder %v2119, 1
          %vm2332 = vcmp.eq.s32.totalorder %v2120, 1
          %vm2333 = vcmp.eq.s32.totalorder %v2121, 1
          %vm2334 = vcmp.eq.s32.totalorder %v2122, 1
          %vm2335 = vcmp.eq.s32.totalorder %v2123, 1
          %vm2336 = vcmp.eq.s32.totalorder %v2124, 1
          %vm2337 = vcmp.eq.s32.totalorder %v2125, 1
          %vm2338 = vcmp.eq.s32.totalorder %v2126, 1
          %vm2339 = vcmp.eq.s32.totalorder %v2127, 1
          %vm2340 = vcmp.eq.s32.totalorder %v2128, 1
          %vm2341 = vcmp.eq.s32.totalorder %v2129, 1
          %vm2342 = vcmp.eq.s32.totalorder %v2130, 1
          %vm2343 = vcmp.eq.s32.totalorder %v2131, 1
          %vm2344 = vcmp.eq.s32.totalorder %v2132, 1
          %vm2345 = vcmp.eq.s32.totalorder %v2133, 1
          %vm2346 = vcmp.eq.s32.totalorder %v2134, 1
          %vm2347 = vcmp.eq.s32.totalorder %v2135, 1
          %vm2348 = vcmp.eq.s32.totalorder %v2136, 1
          %vm2349 = vcmp.eq.s32.totalorder %v2137, 1
          %vm2350 = vcmp.eq.s32.totalorder %v2138, 1
          %vm2351 = vcmp.eq.s32.totalorder %v2139, 1
          %vm2352 = vcmp.eq.s32.totalorder %v2140, 1
          %vm2353 = vcmp.eq.s32.totalorder %v2141, 1
          %vm2354 = vcmp.eq.s32.totalorder %v2142, 1
          %vm2355 = vcmp.eq.s32.totalorder %v2143, 1
          %vm2356 = vcmp.eq.s32.totalorder %v2144, 1
          %vm2357 = vcmp.eq.s32.totalorder %v2145, 1
          %vm2358 = vcmp.eq.s32.totalorder %v2146, 1
          %vm2359 = vcmp.eq.s32.totalorder %v2147, 1
          %vm2360 = vcmp.eq.s32.totalorder %v2148, 1
          %vm2361 = vcmp.eq.s32.totalorder %v2149, 1
          %vm2362 = vcmp.eq.s32.totalorder %v2150, 1
          %vm2363 = vcmp.eq.s32.totalorder %v2151, 1
          %vm2364 = vcmp.eq.s32.totalorder %v2152, 1
          %vm2365 = vcmp.eq.s32.totalorder %v2153, 1
          %vm2366 = vcmp.eq.s32.totalorder %v2154, 1
          %vm2367 = vcmp.eq.s32.totalorder %v2155, 1
          %vm2368 = vcmp.eq.s32.totalorder %v2156, 1
          %vm2369 = vcmp.eq.s32.totalorder %v2157, 1
          %vm2370 = vcmp.eq.s32.totalorder %v2158, 1
          %vm2371 = vcmp.eq.s32.totalorder %v2159, 1
          %vm2372 = vcmp.eq.s32.totalorder %v2160, 1
          %vm2373 = vcmp.eq.s32.totalorder %v2161, 1
          %vm2374 = vcmp.eq.s32.totalorder %v2162, 1
          %vm2375 = vcmp.eq.s32.totalorder %v2163, 1
          %vm2376 = vcmp.eq.s32.totalorder %v2164, 1
          %vm2377 = vcmp.eq.s32.totalorder %v2165, 1
          %vm2378 = vcmp.eq.s32.totalorder %v2166, 1
          %vm2379 = vcmp.eq.s32.totalorder %v2167, 1
          %vm2380 = vcmp.eq.s32.totalorder %v2168, 1
          %vm2381 = vcmp.eq.s32.totalorder %v2169, 1
          %vm2382 = vcmp.eq.s32.totalorder %v2170, 1
          %vm2383 = vcmp.eq.s32.totalorder %v2171, 1
          %vm2384 = vcmp.eq.s32.totalorder %v2172, 1
          %vm2385 = vcmp.eq.s32.totalorder %v2173, 1
          %vm2386 = vcmp.eq.s32.totalorder %v2174, 1
          %vm2387 = vcmp.eq.s32.totalorder %v2175, 1
          %vm2388 = vcmp.eq.s32.totalorder %v2176, 1
          %vm2389 = vcmp.eq.s32.totalorder %v2177, 1
          %vm2390 = vcmp.eq.s32.totalorder %v2178, 1
          %vm2391 = vcmp.eq.s32.totalorder %v2179, 1
          %vm2392 = vcmp.eq.s32.totalorder %v2180, 1
          %vm2393 = vcmp.eq.s32.totalorder %v2181, 1
          %vm2394 = vcmp.eq.s32.totalorder %v2182, 1
          %vm2395 = vcmp.eq.s32.totalorder %v2183, 1
          %vm2396 = vcmp.eq.s32.totalorder %v2184, 1
          %vm2397 = vcmp.eq.s32.totalorder %v2185, 1
          %vm2398 = vcmp.eq.s32.totalorder %v2186, 1
          %vm2399 = vcmp.eq.s32.totalorder %v2187, 1
          %vm2400 = vcmp.eq.s32.totalorder %v2188, 1
          %vm2401 = vcmp.eq.s32.totalorder %v2189, 1
          %vm2402 = vcmp.eq.s32.totalorder %v2190, 1
          %vm2403 = vcmp.eq.s32.totalorder %v2191, 1
          %vm2404 = vcmp.eq.s32.totalorder %v2192, 1
          %vm2405 = vcmp.eq.s32.totalorder %v2193, 1
          %vm2406 = vcmp.eq.s32.totalorder %v2194, 1
          %vm2407 = vcmp.eq.s32.totalorder %v2195, 1
          %vm2408 = vcmp.eq.s32.totalorder %v2196, 1
          %v2409 = vsel %vm2197, %v908, 0.0
          %v2410 = vsel %vm2198, %v909, 0.0
          %v2411 = vsel %vm2199, %v910, 0.0
          %v2412 = vsel %vm2200, %v911, 0.0
          %v2413 = vsel %vm2201, %v912, 0.0
          %v2414 = vsel %vm2202, %v913, 0.0
          %v2415 = vsel %vm2203, %v914, 0.0
          %v2416 = vsel %vm2204, %v915, 0.0
          %v2417 = vsel %vm2205, %v916, 0.0
          %v2418 = vsel %vm2206, %v917, 0.0
          %v2419 = vsel %vm2207, %v918, 0.0
          %v2420 = vsel %vm2208, %v919, 0.0
          %v2421 = vsel %vm2209, %v920, 0.0
          %v2422 = vsel %vm2210, %v921, 0.0
          %v2423 = vsel %vm2211, %v922, 0.0
          %v2424 = vsel %vm2212, %v923, 0.0
          %v2425 = vsel %vm2213, %v924, 0.0
          %v2426 = vsel %vm2214, %v925, 0.0
          %v2427 = vsel %vm2215, %v926, 0.0
          %v2428 = vsel %vm2216, %v927, 0.0
          %v2429 = vsel %vm2217, %v928, 0.0
          %v2430 = vsel %vm2218, %v929, 0.0
          %v2431 = vsel %vm2219, %v930, 0.0
          %v2432 = vsel %vm2220, %v931, 0.0
          %v2433 = vsel %vm2221, %v932, 0.0
          %v2434 = vsel %vm2222, %v933, 0.0
          %v2435 = vsel %vm2223, %v934, 0.0
          %v2436 = vsel %vm2224, %v935, 0.0
          %v2437 = vsel %vm2225, %v936, 0.0
          %v2438 = vsel %vm2226, %v937, 0.0
          %v2439 = vsel %vm2227, %v938, 0.0
          %v2440 = vsel %vm2228, %v939, 0.0
          %v2441 = vsel %vm2229, %v940, 0.0
          %v2442 = vsel %vm2230, %v941, 0.0
          %v2443 = vsel %vm2231, %v942, 0.0
          %v2444 = vsel %vm2232, %v943, 0.0
          %v2445 = vsel %vm2233, %v944, 0.0
          %v2446 = vsel %vm2234, %v945, 0.0
          %v2447 = vsel %vm2235, %v946, 0.0
          %v2448 = vsel %vm2236, %v947, 0.0
          %v2449 = vsel %vm2237, %v948, 0.0
          %v2450 = vsel %vm2238, %v949, 0.0
          %v2451 = vsel %vm2239, %v950, 0.0
          %v2452 = vsel %vm2240, %v951, 0.0
          %v2453 = vsel %vm2241, %v952, 0.0
          %v2454 = vsel %vm2242, %v953, 0.0
          %v2455 = vsel %vm2243, %v954, 0.0
          %v2456 = vsel %vm2244, %v955, 0.0
          %v2457 = vsel %vm2245, %v956, 0.0
          %v2458 = vsel %vm2246, %v957, 0.0
          %v2459 = vsel %vm2247, %v958, 0.0
          %v2460 = vsel %vm2248, %v959, 0.0
          %v2461 = vsel %vm2249, %v960, 0.0
          %v2462 = vsel %vm2250, %v961, 0.0
          %v2463 = vsel %vm2251, %v962, 0.0
          %v2464 = vsel %vm2252, %v963, 0.0
          %v2465 = vsel %vm2253, %v964, 0.0
          %v2466 = vsel %vm2254, %v965, 0.0
          %v2467 = vsel %vm2255, %v966, 0.0
          %v2468 = vsel %vm2256, %v967, 0.0
          %v2469 = vsel %vm2257, %v968, 0.0
          %v2470 = vsel %vm2258, %v969, 0.0
          %v2471 = vsel %vm2259, %v970, 0.0
          %v2472 = vsel %vm2260, %v971, 0.0
          %v2473 = vsel %vm2261, %v972, 0.0
          %v2474 = vsel %vm2262, %v973, 0.0
          %v2475 = vsel %vm2263, %v974, 0.0
          %v2476 = vsel %vm2264, %v975, 0.0
          %v2477 = vsel %vm2265, %v976, 0.0
          %v2478 = vsel %vm2266, %v977, 0.0
          %v2479 = vsel %vm2267, %v978, 0.0
          %v2480 = vsel %vm2268, %v979, 0.0
          %v2481 = vsel %vm2269, %v980, 0.0
          %v2482 = vsel %vm2270, %v981, 0.0
          %v2483 = vsel %vm2271, %v982, 0.0
          %v2484 = vsel %vm2272, %v983, 0.0
          %v2485 = vsel %vm2273, %v984, 0.0
          %v2486 = vsel %vm2274, %v985, 0.0
          %v2487 = vsel %vm2275, %v986, 0.0
          %v2488 = vsel %vm2276, %v987, 0.0
          %v2489 = vsel %vm2277, %v988, 0.0
          %v2490 = vsel %vm2278, %v989, 0.0
          %v2491 = vsel %vm2279, %v990, 0.0
          %v2492 = vsel %vm2280, %v991, 0.0
          %v2493 = vsel %vm2281, %v992, 0.0
          %v2494 = vsel %vm2282, %v993, 0.0
          %v2495 = vsel %vm2283, %v994, 0.0
          %v2496 = vsel %vm2284, %v995, 0.0
          %v2497 = vsel %vm2285, %v996, 0.0
          %v2498 = vsel %vm2286, %v997, 0.0
          %v2499 = vsel %vm2287, %v998, 0.0
          %v2500 = vsel %vm2288, %v999, 0.0
          %v2501 = vsel %vm2289, %v1000, 0.0
          %v2502 = vsel %vm2290, %v1001, 0.0
          %v2503 = vsel %vm2291, %v1002, 0.0
          %v2504 = vsel %vm2292, %v1003, 0.0
          %v2505 = vsel %vm2293, %v1004, 0.0
          %v2506 = vsel %vm2294, %v1005, 0.0
          %v2507 = vsel %vm2295, %v1006, 0.0
          %v2508 = vsel %vm2296, %v1007, 0.0
          %v2509 = vsel %vm2297, %v1008, 0.0
          %v2510 = vsel %vm2298, %v1009, 0.0
          %v2511 = vsel %vm2299, %v1010, 0.0
          %v2512 = vsel %vm2300, %v1011, 0.0
          %v2513 = vsel %vm2301, %v1012, 0.0
          %v2514 = vsel %vm2302, %v1013, 0.0
          %v2515 = vsel %vm2303, %v1014, 0.0
          %v2516 = vsel %vm2304, %v1015, 0.0
          %v2517 = vsel %vm2305, %v1016, 0.0
          %v2518 = vsel %vm2306, %v1017, 0.0
          %v2519 = vsel %vm2307, %v1018, 0.0
          %v2520 = vsel %vm2308, %v1019, 0.0
          %v2521 = vsel %vm2309, %v1020, 0.0
          %v2522 = vsel %vm2310, %v1021, 0.0
          %v2523 = vsel %vm2311, %v1022, 0.0
          %v2524 = vsel %vm2312, %v1023, 0.0
          %v2525 = vsel %vm2313, %v1024, 0.0
          %v2526 = vsel %vm2314, %v1025, 0.0
          %v2527 = vsel %vm2315, %v1026, 0.0
          %v2528 = vsel %vm2316, %v1027, 0.0
          %v2529 = vsel %vm2317, %v1028, 0.0
          %v2530 = vsel %vm2318, %v1029, 0.0
          %v2531 = vsel %vm2319, %v1030, 0.0
          %v2532 = vsel %vm2320, %v1031, 0.0
          %v2533 = vsel %vm2321, %v1032, 0.0
          %v2534 = vsel %vm2322, %v1033, 0.0
          %v2535 = vsel %vm2323, %v1034, 0.0
          %v2536 = vsel %vm2324, %v1035, 0.0
          %v2537 = vsel %vm2325, %v1036, 0.0
          %v2538 = vsel %vm2326, %v1037, 0.0
          %v2539 = vsel %vm2327, %v1038, 0.0
          %v2540 = vsel %vm2328, %v1039, 0.0
          %v2541 = vsel %vm2329, %v1040, 0.0
          %v2542 = vsel %vm2330, %v1041, 0.0
          %v2543 = vsel %vm2331, %v1042, 0.0
          %v2544 = vsel %vm2332, %v1043, 0.0
          %v2545 = vsel %vm2333, %v1044, 0.0
          %v2546 = vsel %vm2334, %v1045, 0.0
          %v2547 = vsel %vm2335, %v1046, 0.0
          %v2548 = vsel %vm2336, %v1047, 0.0
          %v2549 = vsel %vm2337, %v1048, 0.0
          %v2550 = vsel %vm2338, %v1049, 0.0
          %v2551 = vsel %vm2339, %v1050, 0.0
          %v2552 = vsel %vm2340, %v1051, 0.0
          %v2553 = vsel %vm2341, %v1052, 0.0
          %v2554 = vsel %vm2342, %v1053, 0.0
          %v2555 = vsel %vm2343, %v1054, 0.0
          %v2556 = vsel %vm2344, %v1055, 0.0
          %v2557 = vsel %vm2345, %v1056, 0.0
          %v2558 = vsel %vm2346, %v1057, 0.0
          %v2559 = vsel %vm2347, %v1058, 0.0
          %v2560 = vsel %vm2348, %v1059, 0.0
          %v2561 = vsel %vm2349, %v1060, 0.0
          %v2562 = vsel %vm2350, %v1061, 0.0
          %v2563 = vsel %vm2351, %v1062, 0.0
          %v2564 = vsel %vm2352, %v1063, 0.0
          %v2565 = vsel %vm2353, %v1064, 0.0
          %v2566 = vsel %vm2354, %v1065, 0.0
          %v2567 = vsel %vm2355, %v1066, 0.0
          %v2568 = vsel %vm2356, %v1067, 0.0
          %v2569 = vsel %vm2357, %v1068, 0.0
          %v2570 = vsel %vm2358, %v1069, 0.0
          %v2571 = vsel %vm2359, %v1070, 0.0
          %v2572 = vsel %vm2360, %v1071, 0.0
          %v2573 = vsel %vm2361, %v1072, 0.0
          %v2574 = vsel %vm2362, %v1073, 0.0
          %v2575 = vsel %vm2363, %v1074, 0.0
          %v2576 = vsel %vm2364, %v1075, 0.0
          %v2577 = vsel %vm2365, %v1076, 0.0
          %v2578 = vsel %vm2366, %v1077, 0.0
          %v2579 = vsel %vm2367, %v1078, 0.0
          %v2580 = vsel %vm2368, %v1079, 0.0
          %v2581 = vsel %vm2369, %v1080, 0.0
          %v2582 = vsel %vm2370, %v1081, 0.0
          %v2583 = vsel %vm2371, %v1082, 0.0
          %v2584 = vsel %vm2372, %v1083, 0.0
          %v2585 = vsel %vm2373, %v1084, 0.0
          %v2586 = vsel %vm2374, %v1085, 0.0
          %v2587 = vsel %vm2375, %v1086, 0.0
          %v2588 = vsel %vm2376, %v1087, 0.0
          %v2589 = vsel %vm2377, %v1088, 0.0
          %v2590 = vsel %vm2378, %v1089, 0.0
          %v2591 = vsel %vm2379, %v1090, 0.0
          %v2592 = vsel %vm2380, %v1091, 0.0
          %v2593 = vsel %vm2381, %v1092, 0.0
          %v2594 = vsel %vm2382, %v1093, 0.0
          %v2595 = vsel %vm2383, %v1094, 0.0
          %v2596 = vsel %vm2384, %v1095, 0.0
          %v2597 = vsel %vm2385, %v1096, 0.0
          %v2598 = vsel %vm2386, %v1097, 0.0
          %v2599 = vsel %vm2387, %v1098, 0.0
          %v2600 = vsel %vm2388, %v1099, 0.0
          %v2601 = vsel %vm2389, %v1100, 0.0
          %v2602 = vsel %vm2390, %v1101, 0.0
          %v2603 = vsel %vm2391, %v1102, 0.0
          %v2604 = vsel %vm2392, %v1103, 0.0
          %v2605 = vsel %vm2393, %v1104, 0.0
          %v2606 = vsel %vm2394, %v1105, 0.0
          %v2607 = vsel %vm2395, %v1106, 0.0
          %v2608 = vsel %vm2396, %v1107, 0.0
          %v2609 = vsel %vm2397, %v1108, 0.0
          %v2610 = vsel %vm2398, %v1109, 0.0
          %v2611 = vsel %vm2399, %v1110, 0.0
          %v2612 = vsel %vm2400, %v1111, 0.0
          %v2613 = vsel %vm2401, %v1112, 0.0
          %v2614 = vsel %vm2402, %v1113, 0.0
          %v2615 = vsel %vm2403, %v1114, 0.0
          %v2616 = vsel %vm2404, %v1115, 0.0
          %v2617 = vsel %vm2405, %v1116, 0.0
          %v2618 = vsel %vm2406, %v1117, 0.0
          %v2619 = vsel %vm2407, %v1118, 0.0
          %v2620 = vsel %vm2408, %v1119, 0.0
          %v2621 = vld [vmem:[#allocation7] sm:$0xff]
          %v2622 = vadd.f32 %v2409, %v2410
          %v2623 = vadd.f32 %v2622, %v2411
          %v2624 = vadd.f32 %v2623, %v2412
          %v2625 = vadd.f32 %v2624, %v2413
          %v2626 = vadd.f32 %v2625, %v2414
          %v2627 = vadd.f32 %v2626, %v2415
          %v2628 = vadd.f32 %v2627, %v2416
          %v2629 = vadd.f32 %v2628, %v2417
          %v2630 = vadd.f32 %v2629, %v2418
          %v2631 = vadd.f32 %v2630, %v2419
          %v2632 = vadd.f32 %v2631, %v2420
          %v2633 = vadd.f32 %v2632, %v2421
          %v2634 = vadd.f32 %v2633, %v2422
          %v2635 = vadd.f32 %v2634, %v2423
          %v2636 = vadd.f32 %v2635, %v2424
          %v2637 = vadd.f32 %v2636, %v2425
          %v2638 = vadd.f32 %v2637, %v2426
          %v2639 = vadd.f32 %v2638, %v2427
          %v2640 = vadd.f32 %v2639, %v2428
          %v2641 = vadd.f32 %v2640, %v2429
          %v2642 = vadd.f32 %v2641, %v2430
          %v2643 = vadd.f32 %v2642, %v2431
          %v2644 = vadd.f32 %v2643, %v2432
          %v2645 = vadd.f32 %v2644, %v2433
          %v2646 = vadd.f32 %v2645, %v2434
          %v2647 = vadd.f32 %v2646, %v2435
          %v2648 = vadd.f32 %v2647, %v2436
          %v2649 = vadd.f32 %v2648, %v2437
          %v2650 = vadd.f32 %v2649, %v2438
          %v2651 = vadd.f32 %v2650, %v2439
          %v2652 = vadd.f32 %v2651, %v2440
          %v2653 = vadd.f32 %v2652, %v2441
          %v2654 = vadd.f32 %v2653, %v2442
          %v2655 = vadd.f32 %v2654, %v2443
          %v2656 = vadd.f32 %v2655, %v2444
          %v2657 = vadd.f32 %v2656, %v2445
          %v2658 = vadd.f32 %v2657, %v2446
          %v2659 = vadd.f32 %v2658, %v2447
          %v2660 = vadd.f32 %v2659, %v2448
          %v2661 = vadd.f32 %v2660, %v2449
          %v2662 = vadd.f32 %v2661, %v2450
          %v2663 = vadd.f32 %v2662, %v2451
          %v2664 = vadd.f32 %v2663, %v2452
          %v2665 = vadd.f32 %v2664, %v2453
          %v2666 = vadd.f32 %v2665, %v2454
          %v2667 = vadd.f32 %v2666, %v2455
          %v2668 = vadd.f32 %v2667, %v2456
          %v2669 = vadd.f32 %v2668, %v2457
          %v2670 = vadd.f32 %v2669, %v2458
          %v2671 = vadd.f32 %v2670, %v2459
          %v2672 = vadd.f32 %v2671, %v2460
          %v2673 = vadd.f32 %v2672, %v2461
          %v2674 = vadd.f32 %v2673, %v2462
          %v2675 = vadd.f32 %v2674, %v2463
          %v2676 = vadd.f32 %v2675, %v2464
          %v2677 = vadd.f32 %v2676, %v2465
          %v2678 = vadd.f32 %v2677, %v2466
          %v2679 = vadd.f32 %v2678, %v2467
          %v2680 = vadd.f32 %v2679, %v2468
          %v2681 = vadd.f32 %v2680, %v2469
          %v2682 = vadd.f32 %v2681, %v2470
          %v2683 = vadd.f32 %v2682, %v2471
          %v2684 = vadd.f32 %v2683, %v2472
          %v2685 = vadd.f32 %v2684, %v2473
          %v2686 = vadd.f32 %v2685, %v2474
          %v2687 = vadd.f32 %v2686, %v2475
          %v2688 = vadd.f32 %v2687, %v2476
          %v2689 = vadd.f32 %v2688, %v2477
          %v2690 = vadd.f32 %v2689, %v2478
          %v2691 = vadd.f32 %v2690, %v2479
          %v2692 = vadd.f32 %v2691, %v2480
          %v2693 = vadd.f32 %v2692, %v2481
          %v2694 = vadd.f32 %v2693, %v2482
          %v2695 = vadd.f32 %v2694, %v2483
          %v2696 = vadd.f32 %v2695, %v2484
          %v2697 = vadd.f32 %v2696, %v2485
          %v2698 = vadd.f32 %v2697, %v2486
          %v2699 = vadd.f32 %v2698, %v2487
          %v2700 = vadd.f32 %v2699, %v2488
          %v2701 = vadd.f32 %v2700, %v2489
          %v2702 = vadd.f32 %v2701, %v2490
          %v2703 = vadd.f32 %v2702, %v2491
          %v2704 = vadd.f32 %v2703, %v2492
          %v2705 = vadd.f32 %v2704, %v2493
          %v2706 = vadd.f32 %v2705, %v2494
          %v2707 = vadd.f32 %v2706, %v2495
          %v2708 = vadd.f32 %v2707, %v2496
          %v2709 = vadd.f32 %v2708, %v2497
          %v2710 = vadd.f32 %v2709, %v2498
          %v2711 = vadd.f32 %v2710, %v2499
          %v2712 = vadd.f32 %v2711, %v2500
          %v2713 = vadd.f32 %v2712, %v2501
          %v2714 = vadd.f32 %v2713, %v2502
          %v2715 = vadd.f32 %v2714, %v2503
          %v2716 = vadd.f32 %v2715, %v2504
          %v2717 = vadd.f32 %v2716, %v2505
          %v2718 = vadd.f32 %v2717, %v2506
          %v2719 = vadd.f32 %v2718, %v2507
          %v2720 = vadd.f32 %v2719, %v2508
          %v2721 = vadd.f32 %v2720, %v2509
          %v2722 = vadd.f32 %v2721, %v2510
          %v2723 = vadd.f32 %v2722, %v2511
          %v2724 = vadd.f32 %v2723, %v2512
          %v2725 = vadd.f32 %v2724, %v2513
          %v2726 = vadd.f32 %v2725, %v2514
          %v2727 = vadd.f32 %v2726, %v2515
          %v2728 = vadd.f32 %v2727, %v2516
          %v2729 = vadd.f32 %v2728, %v2517
          %v2730 = vadd.f32 %v2729, %v2518
          %v2731 = vadd.f32 %v2730, %v2519
          %v2732 = vadd.f32 %v2731, %v2520
          %v2733 = vadd.f32 %v2732, %v2521
          %v2734 = vadd.f32 %v2733, %v2522
          %v2735 = vadd.f32 %v2734, %v2523
          %v2736 = vadd.f32 %v2735, %v2524
          %v2737 = vadd.f32 %v2736, %v2525
          %v2738 = vadd.f32 %v2737, %v2526
          %v2739 = vadd.f32 %v2738, %v2527
          %v2740 = vadd.f32 %v2739, %v2528
          %v2741 = vadd.f32 %v2740, %v2529
          %v2742 = vadd.f32 %v2741, %v2530
          %v2743 = vadd.f32 %v2742, %v2531
          %v2744 = vadd.f32 %v2743, %v2532
          %v2745 = vadd.f32 %v2744, %v2533
          %v2746 = vadd.f32 %v2745, %v2534
          %v2747 = vadd.f32 %v2746, %v2535
          %v2748 = vadd.f32 %v2747, %v2536
          %v2749 = vadd.f32 %v2748, %v2537
          %v2750 = vadd.f32 %v2749, %v2538
          %v2751 = vadd.f32 %v2750, %v2539
          %v2752 = vadd.f32 %v2751, %v2540
          %v2753 = vadd.f32 %v2752, %v2541
          %v2754 = vadd.f32 %v2753, %v2542
          %v2755 = vadd.f32 %v2754, %v2543
          %v2756 = vadd.f32 %v2755, %v2544
          %v2757 = vadd.f32 %v2756, %v2545
          %v2758 = vadd.f32 %v2757, %v2546
          %v2759 = vadd.f32 %v2758, %v2547
          %v2760 = vadd.f32 %v2759, %v2548
          %v2761 = vadd.f32 %v2760, %v2549
          %v2762 = vadd.f32 %v2761, %v2550
          %v2763 = vadd.f32 %v2762, %v2551
          %v2764 = vadd.f32 %v2763, %v2552
          %v2765 = vadd.f32 %v2764, %v2553
          %v2766 = vadd.f32 %v2765, %v2554
          %v2767 = vadd.f32 %v2766, %v2555
          %v2768 = vadd.f32 %v2767, %v2556
          %v2769 = vadd.f32 %v2768, %v2557
          %v2770 = vadd.f32 %v2769, %v2558
          %v2771 = vadd.f32 %v2770, %v2559
          %v2772 = vadd.f32 %v2771, %v2560
          %v2773 = vadd.f32 %v2772, %v2561
          %v2774 = vadd.f32 %v2773, %v2562
          %v2775 = vadd.f32 %v2774, %v2563
          %v2776 = vadd.f32 %v2775, %v2564
          %v2777 = vadd.f32 %v2776, %v2565
          %v2778 = vadd.f32 %v2777, %v2566
          %v2779 = vadd.f32 %v2778, %v2567
          %v2780 = vadd.f32 %v2779, %v2568
          %v2781 = vadd.f32 %v2780, %v2569
          %v2782 = vadd.f32 %v2781, %v2570
          %v2783 = vadd.f32 %v2782, %v2571
          %v2784 = vadd.f32 %v2783, %v2572
          %v2785 = vadd.f32 %v2784, %v2573
          %v2786 = vadd.f32 %v2785, %v2574
          %v2787 = vadd.f32 %v2786, %v2575
          %v2788 = vadd.f32 %v2787, %v2576
          %v2789 = vadd.f32 %v2788, %v2577
          %v2790 = vadd.f32 %v2789, %v2578
          %v2791 = vadd.f32 %v2790, %v2579
          %v2792 = vadd.f32 %v2791, %v2580
          %v2793 = vadd.f32 %v2792, %v2581
          %v2794 = vadd.f32 %v2793, %v2582
          %v2795 = vadd.f32 %v2794, %v2583
          %v2796 = vadd.f32 %v2795, %v2584
          %v2797 = vadd.f32 %v2796, %v2585
          %v2798 = vadd.f32 %v2797, %v2586
          %v2799 = vadd.f32 %v2798, %v2587
          %v2800 = vadd.f32 %v2799, %v2588
          %v2801 = vadd.f32 %v2800, %v2589
          %v2802 = vadd.f32 %v2801, %v2590
          %v2803 = vadd.f32 %v2802, %v2591
          %v2804 = vadd.f32 %v2803, %v2592
          %v2805 = vadd.f32 %v2804, %v2593
          %v2806 = vadd.f32 %v2805, %v2594
          %v2807 = vadd.f32 %v2806, %v2595
          %v2808 = vadd.f32 %v2807, %v2596
          %v2809 = vadd.f32 %v2808, %v2597
          %v2810 = vadd.f32 %v2809, %v2598
          %v2811 = vadd.f32 %v2810, %v2599
          %v2812 = vadd.f32 %v2811, %v2600
          %v2813 = vadd.f32 %v2812, %v2601
          %v2814 = vadd.f32 %v2813, %v2602
          %v2815 = vadd.f32 %v2814, %v2603
          %v2816 = vadd.f32 %v2815, %v2604
          %v2817 = vadd.f32 %v2816, %v2605
          %v2818 = vadd.f32 %v2817, %v2606
          %v2819 = vadd.f32 %v2818, %v2607
          %v2820 = vadd.f32 %v2819, %v2608
          %v2821 = vadd.f32 %v2820, %v2609
          %v2822 = vadd.f32 %v2821, %v2610
          %v2823 = vadd.f32 %v2822, %v2611
          %v2824 = vadd.f32 %v2823, %v2612
          %v2825 = vadd.f32 %v2824, %v2613
          %v2826 = vadd.f32 %v2825, %v2614
          %v2827 = vadd.f32 %v2826, %v2615
          %v2828 = vadd.f32 %v2827, %v2616
          %v2829 = vadd.f32 %v2828, %v2617
          %v2830 = vadd.f32 %v2829, %v2618
          %v2831 = vadd.f32 %v2830, %v2619
          %v2832 = vadd.f32 %v2831, %v2620
          %v2833 = vadd.f32 %v2621, %v2832
          %2834 = vst [vmem:[#allocation7] sm:$0xff] %v2833
        $region48: #{tpu_custom_call.1} parent=27 // pred_fallthru
          _
        // Predicated region
        $region49: #{tpu_custom_call.1} parent=27 // pred_check
          %p2835 = pneg %p118
        $region50: #{tpu_custom_call.1} parent=27 // pred_check_branch
          %2837 = sbr.rel (%p2835) target = $region52
        $region51: #{tpu_custom_call.1} parent=27 // pred_region
          %2839 = vsyncadd [#allocation4], 0
          %s2840 = smul.addr %s24, 8
          %s2841 = scalar_lea.hbm %s2, %s2840
          %s2843 = sshll.u32 [#allocation7], 4
          %s2844 = int_to_ptr.vmem [resolvable:$true] %s2843
          %s2845 = sshll.u32 %s2841, 4
          %s2846 = int_to_ptr.hbm [resolvable:$true] %s2845
          %2848 = dma.vmem_to_hbm [thread:$0]  %s2844, 128, %s2846, [#allocation4]
        $region52: #{tpu_custom_call.1} parent=27 // pred_fallthru
          _
        // Predicated region
        $region53: #{tpu_custom_call.1} parent=27 // pred_check
          %p2849 = pneg %p118
        $region54: #{tpu_custom_call.1} parent=27 // pred_check_branch
          %2851 = sbr.rel (%p2849) target = $region56
        $region55: #{tpu_custom_call.1} parent=27 // pred_region
          %2853 = dma.done [#allocation4], 128
        $region56: #{tpu_custom_call.1} parent=27 // pred_fallthru
          _
      $region28: #{tpu_custom_call.1} parent=5 // pred_fallthru
        _
      %p2854 = scmp.le.s32.totalorder 2, %s15
      // Predicated region
      $region57: #{tpu_custom_call.1} parent=5 // pred_check
        %p2855 = pneg %p2854
      $region58: #{tpu_custom_call.1} parent=5 // pred_check_branch
        %2857 = sbr.rel (%p2855) target = $region60
      $region59: #{tpu_custom_call.1} parent=5 // pred_region
        %s2858 = ssub.s32 %s15, 2
      $region60: #{tpu_custom_call.1} parent=5 // pred_fallthru
        _
    $region6: #{tpu_custom_call.1} parent=1 // loop_footer
      %s19 = sadd.s32 1, %s15
    $region7: #{tpu_custom_call.1} parent=1 // loop_footer_branch
      %14 = sbr.rel target = $region3
    $region8: #{tpu_custom_call.1} parent=1 // loop_exit
      _
    %2859 = vsyncpa [#allocation3], 1
    %s2860 = scalar_lea.sflag [#allocation3], 1
    %2861 = vsyncpa %s2860, 1
    %2862 = vsyncpa [#allocation6], 1
    %s2863 = scalar_lea.sflag [#allocation6], 1
    %2864 = vsyncpa %s2863, 1
    %2865 = vsyncpa [#allocation4], 1
    %s2866 = scalar_lea.sflag [#allocation4], 1
    %2867 = vsyncpa %s2866, 1

</llo_original>
